<compile_context>
chip_gen: v7x
topology: tpu7x:2x2x1
jax: 0.10.0
libtpu: 0.0.40
codegen_flags: <defaults>
</compile_context>

<pallas_src>
import functools
import math

import jax
import jax.numpy as jnp
from jax.experimental import pallas as pl
from jax.experimental.pallas import tpu as pltpu


def _adapter_kernel(x_ref, wf_ref, b_ref, o_ref, acc_ref, *, patch):
    # x_ref  : (b_tile, C, r_tile, S) f32  -- raw NCHW image rows (no copy)
    # wf_ref : (C, P, S, D)           bf16 -- W[(c,pi,j%P),:] / N (host-built)
    # b_ref  : (1, D)                 f32  -- bias
    # o_ref  : (b_tile, D)            f32  -- pooled features
    # acc_ref: (b_tile, C, P, S)      f32  -- running row-folded spatial sum
    ri = pl.program_id(1)

    @pl.when(ri == 0)
    def _init():
        acc_ref[...] = jnp.zeros_like(acc_ref)

    # Fold this row-block by (row mod P): pure f32 VPU adds on the native
    # layout (patch == 8 == sublane tile), one accumulator RMW per grid step.
    r_tile = x_ref.shape[2]
    part = x_ref[:, :, pl.ds(0, patch), :]
    for g in range(1, r_tile // patch):
        part = part + x_ref[:, :, pl.ds(g * patch, patch), :]
    acc_ref[...] += part

    @pl.when(ri == pl.num_programs(1) - 1)
    def _finalize():
        # feat[b,d] = sum_{c,pi,j} rowsum[b,c,pi,j] * W[(c,pi,j%P),d] / N + b[d]
        #           = mean_patches(x) @ W + b     (mean is linear; exact)
        C, P = wf_ref.shape[0], wf_ref.shape[1]
        feat = jnp.zeros(o_ref.shape, dtype=jnp.float32)
        for c in range(C):
            for pi in range(P):
                row = acc_ref[:, c, pi, :].astype(jnp.bfloat16)    # (b_tile, S)
                feat = feat + jnp.dot(row, wf_ref[c, pi],
                                      preferred_element_type=jnp.float32)
        o_ref[...] = feat + b_ref[...]


def _vmem_limit_bytes():
    """Half of physical VMEM (compiler headroom), capped at 64 MiB."""
    try:
        phys = int(pltpu.get_tpu_info().vmem_capacity_bytes)
    except Exception:
        phys = 64 << 20                      # conservative (v7x-sized) fallback
    return int(min(64 << 20, max(16 << 20, phys // 2)))


def jit_adapter_forward(x, w, b, *, patch=8, b_tile=None, r_tile=None):
    """Forward pass.

    x: (B, 3, S, S) f32 NCHW; w: (K, D) with K = 3*patch*patch ordered
    (c, pi, pj); b: (D,).  Returns (B, D) f32 pooled features.
    """
    B, C, S, S2 = x.shape
    assert S == S2 and S % patch == 0
    P = patch
    N = (S // P) * (S // P)
    D = w.shape[1]
    assert w.shape[0] == C * P * P

    # --- host-side weight prep (one-time) --------------------------------
    # Absorb the width fold (j -> j mod P) and the 1/N mean scale into W so
    # the kernel never touches the lane dimension.
    wf = (w.astype(jnp.float32) * (1.0 / float(N))).reshape(C, P, P, D)
    wf = jnp.tile(wf, (1, 1, S // P, 1)).astype(jnp.bfloat16)       # (C,P,S,D)
    b_f32 = b.reshape(1, D).astype(jnp.float32)

    # --- batch padding / tiling -------------------------------------------
    B_pad = B
    if B % 8 != 0 and B > 8:
        B_pad = ((B + 7) // 8) * 8
        x = jnp.pad(x, ((0, B_pad - B), (0, 0), (0, 0), (0, 0)))

    if b_tile is None:
        cands = [d for d in range(8, min(B_pad, 128) + 1, 8) if B_pad % d == 0]
        if B_pad >= 16:                        # keep >=2 parallel batch blocks
            cands = [d for d in cands if d <= B_pad // 2] or cands  # (v7x 2 TCs)
        b_tile = max(cands) if cands else B_pad
    assert B_pad % b_tile == 0

    vmem_limit = _vmem_limit_bytes()
    if r_tile is None:
        # Largest multiple-of-lcm(P,8) divisor of S whose double-buffered f32
        # x block stays under ~1/4 of the scoped VMEM limit.
        step = P if P % 8 == 0 else (8 * P) // math.gcd(P, 8)
        budget = min(8 << 20, vmem_limit // 4)
        row_bytes = b_tile * C * S * 4
        cands = [r for r in range(step, S + 1, step)
                 if S % r == 0 and 2 * r * row_bytes <= budget]
        r_tile = max(cands) if cands else min(step, S)
    assert S % r_tile == 0 and r_tile % P == 0

    grid = (B_pad // b_tile, S // r_tile)

    cost = pl.CostEstimate(
        flops=B_pad * C * S * S + 2 * B_pad * C * P * S * D,
        transcendentals=0,
        bytes_accessed=(B_pad * C * S * S * 4 + C * P * S * D * 2
                        + D * 4 + B_pad * D * 4),
    )

    out = pl.pallas_call(
        functools.partial(_adapter_kernel, patch=P),
        out_shape=jax.ShapeDtypeStruct((B_pad, D), jnp.float32),
        grid_spec=pltpu.PrefetchScalarGridSpec(
            num_scalar_prefetch=0,
            grid=grid,
            in_specs=[
                # x: tiled over (batch, image rows); C and width kept whole.
                pl.BlockSpec((b_tile, C, r_tile, S),
                             lambda bi, ri: (bi, 0, ri, 0)),
                # Replicated weight / bias: constant block -> VMEM-resident.
                # TODO(synk): single-buffer these (pl.Buffered(1)) for large D
                # on v7x; at D=128 the saving is negligible.
                pl.BlockSpec((C, P, S, D), lambda bi, ri: (0, 0, 0, 0)),
                pl.BlockSpec((1, D), lambda bi, ri: (0, 0)),
            ],
            # Same output block across the row axis -> resident output tile.
            out_specs=pl.BlockSpec((b_tile, D), lambda bi, ri: (bi, 0)),
            scratch_shapes=[pltpu.VMEM((b_tile, C, P, S), jnp.float32)],
        ),
        compiler_params=pltpu.CompilerParams(
            # Batch axis parallel (v7x: shard batch tiles across both TCs),
            # row axis is the reduction -> arbitrary, last.
            dimension_semantics=("parallel", "arbitrary"),
            vmem_limit_bytes=vmem_limit,
        ),
        cost_estimate=cost,
    )(x, wf, b_f32)
    return out[:B]


def reference_forward(x, w, b, *, patch=8):
    """Pure-JAX reference with the same autocast precision path."""
    B, C, S, _ = x.shape
    P = patch
    nP = S // P
    N = nP * nP
    K = C * P * P
    patches = (x.reshape(B, C, nP, P, nP, P)
                .transpose(0, 2, 4, 1, 3, 5)
                .reshape(B, N, K))
    p_mean = jnp.mean(patches, axis=1)                   # f32 pooling
    feat = jnp.dot(p_mean.astype(jnp.bfloat16), w.astype(jnp.bfloat16),
                   preferred_element_type=jnp.float32)
    return feat + b.reshape(1, -1).astype(jnp.float32)


if __name__ == "__main__":
    # Small shapes consistent with the module's (B, 3, size, size) NCHW input.
    B, C, S = 2, 3, 32          # size=32 (small stand-in for 224)
    P = 8                       # patch size -> N = 16 patches
    D = 128                     # feature dim
    K = C * P * P               # 192

    key = jax.random.PRNGKey(0)
    kx, kw, kb = jax.random.split(key, 3)
    x = jax.random.normal(kx, (B, C, S, S), dtype=jnp.float32)
    w = jax.random.normal(kw, (K, D), dtype=jnp.float32) * 0.02
    b = jax.random.normal(kb, (D,), dtype=jnp.float32) * 0.01

    # r_tile=8 -> 4-step row reduction, exercising the pipelined accumulator.
    feats = jax.block_until_ready(
        jit_adapter_forward(x, w, b, patch=P, r_tile=8))
    ref = jax.block_until_ready(reference_forward(x, w, b, patch=P))

    assert feats.shape == (B, D)
    err = float(jnp.max(jnp.abs(feats - ref)))
    assert jnp.allclose(feats, ref, atol=1e-2, rtol=1e-2), err
    print("KERNEL_OK")
</pallas_src>

<mosaic_0001>
module attributes {stable_mosaic.version = 11 : i64} {
  func.func @_adapter_kernel(%arg0: i32, %arg1: i32, %arg2: memref<2x3x8x32xf32, #tpu.memory_space<vmem>>, %arg3: memref<3x8x32x128xbf16, #tpu.memory_space<vmem>>, %arg4: memref<1x128xf32, #tpu.memory_space<vmem>>, %arg5: memref<2x128xf32, #tpu.memory_space<vmem>>, %arg6: memref<2x3x8x32xf32, #tpu.memory_space<vmem>>) attributes {dimension_semantics = [#tpu.dimension_semantics<parallel>, #tpu.dimension_semantics<arbitrary>], iteration_bounds = array<i64: 1, 4>, scalar_prefetch = 0 : i64, scratch_operands = 1 : i64, tpu.core_type = #tpu.core_type<tc>, window_params = [{transform_indices = @transform_0, window_bounds = array<i64: 2, 3, 8, 32>}, {pipeline_mode = #tpu.pipeline_mode<synchronous>, transform_indices = @transform_1, window_bounds = array<i64: 3, 8, 32, 128>}, {pipeline_mode = #tpu.pipeline_mode<synchronous>, transform_indices = @transform_2, window_bounds = array<i64: 1, 128>}, {transform_indices = @transform_3, window_bounds = array<i64: 2, 128>}]} {
    %c0_i32 = arith.constant 0 : i32
    %0 = arith.cmpi eq, %arg1, %c0_i32 : i32
    %1 = arith.extui %0 : i1 to i32
    %c0_i32_0 = arith.constant 0 : i32
    %2 = arith.cmpi ne, %1, %c0_i32_0 : i32
    scf.if %2 {
      %cst = arith.constant 0.000000e+00 : f32
      %10 = vector.broadcast %cst : f32 to vector<2x3x8x32xf32>
      %c0_13 = arith.constant 0 : index
      %c0_14 = arith.constant 0 : index
      %c0_15 = arith.constant 0 : index
      %c0_16 = arith.constant 0 : index
      %11 = vector.load %arg6[%c0_13, %c0_14, %c0_15, %c0_16] : memref<2x3x8x32xf32, #tpu.memory_space<vmem>>, vector<2x3x8x32xf32>
      tpu.vector_store %arg6[%c0_13, %c0_14, %c0_15, %c0_16], %10 {strides = array<i32>} : memref<2x3x8x32xf32, #tpu.memory_space<vmem>>, vector<2x3x8x32xf32>,
    } else {
    }
    %c0 = arith.constant 0 : index
    %c0_1 = arith.constant 0 : index
    %c0_2 = arith.constant 0 : index
    %c0_3 = arith.constant 0 : index
    %3 = vector.load %arg2[%c0, %c0_1, %c0_2, %c0_3] : memref<2x3x8x32xf32, #tpu.memory_space<vmem>>, vector<2x3x8x32xf32>
    %c0_4 = arith.constant 0 : index
    %c0_5 = arith.constant 0 : index
    %c0_6 = arith.constant 0 : index
    %c0_7 = arith.constant 0 : index
    %4 = vector.load %arg6[%c0_4, %c0_5, %c0_6, %c0_7] : memref<2x3x8x32xf32, #tpu.memory_space<vmem>>, vector<2x3x8x32xf32>
    %5 = arith.addf %4, %3 : vector<2x3x8x32xf32>
    %c0_8 = arith.constant 0 : index
    %c0_9 = arith.constant 0 : index
    %c0_10 = arith.constant 0 : index
    %c0_11 = arith.constant 0 : index
    %6 = vector.load %arg6[%c0_8, %c0_9, %c0_10, %c0_11] : memref<2x3x8x32xf32, #tpu.memory_space<vmem>>, vector<2x3x8x32xf32>
    tpu.vector_store %arg6[%c0_8, %c0_9, %c0_10, %c0_11], %5 {strides = array<i32>} : memref<2x3x8x32xf32, #tpu.memory_space<vmem>>, vector<2x3x8x32xf32>,
    %c3_i32 = arith.constant 3 : i32
    %7 = arith.cmpi eq, %arg1, %c3_i32 : i32
    %8 = arith.extui %7 : i1 to i32
    %c0_i32_12 = arith.constant 0 : i32
    %9 = arith.cmpi ne, %8, %c0_i32_12 : i32
    scf.if %9 {
      %cst = arith.constant 0.000000e+00 : f32
      %10 = vector.broadcast %cst : f32 to vector<2x128xf32>
      %c0_13 = arith.constant 0 : index
      %c0_14 = arith.constant 0 : index
      %c0_15 = arith.constant 0 : index
      %c0_16 = arith.constant 0 : index
      %11 = vector.load %arg6[%c0_13, %c0_14, %c0_15, %c0_16] : memref<2x3x8x32xf32, #tpu.memory_space<vmem>>, vector<2x1x1x32xf32>
      %12 = vector.shape_cast %11 : vector<2x1x1x32xf32> to vector<2x32xf32>
      %13 = arith.truncf %12 : vector<2x32xf32> to vector<2x32xbf16>
      %c0_17 = arith.constant 0 : index
      %c0_18 = arith.constant 0 : index
      %c0_19 = arith.constant 0 : index
      %c0_20 = arith.constant 0 : index
      %14 = vector.load %arg3[%c0_17, %c0_18, %c0_19, %c0_20] : memref<3x8x32x128xbf16, #tpu.memory_space<vmem>>, vector<1x1x32x128xbf16>
      %15 = vector.shape_cast %14 : vector<1x1x32x128xbf16> to vector<32x128xbf16>
      %cst_21 = arith.constant dense<0.000000e+00> : vector<2x128xf32>
      %16 = tpu.matmul %13, %15, %cst_21 {dimension_numbers = #tpu.dot_dimension_numbers<[1], [0], [0], [1], [0, 0, 1, 1], [], []>} : vector<2x32xbf16>, vector<32x128xbf16>, vector<2x128xf32> -> vector<2x128xf32>
      %17 = arith.addf %10, %16 : vector<2x128xf32>
      %c0_22 = arith.constant 0 : index
      %c0_23 = arith.constant 0 : index
      %c1 = arith.constant 1 : index
      %c0_24 = arith.constant 0 : index
      %18 = vector.load %arg6[%c0_22, %c0_23, %c1, %c0_24] : memref<2x3x8x32xf32, #tpu.memory_space<vmem>>, vector<2x1x1x32xf32>
      %19 = vector.shape_cast %18 : vector<2x1x1x32xf32> to vector<2x32xf32>
      %20 = arith.truncf %19 : vector<2x32xf32> to vector<2x32xbf16>
      %c0_25 = arith.constant 0 : index
      %c1_26 = arith.constant 1 : index
      %c0_27 = arith.constant 0 : index
      %c0_28 = arith.constant 0 : index
      %21 = vector.load %arg3[%c0_25, %c1_26, %c0_27, %c0_28] : memref<3x8x32x128xbf16, #tpu.memory_space<vmem>>, vector<1x1x32x128xbf16>
      %22 = vector.shape_cast %21 : vector<1x1x32x128xbf16> to vector<32x128xbf16>
      %cst_29 = arith.constant dense<0.000000e+00> : vector<2x128xf32>
      %23 = tpu.matmul %20, %22, %cst_29 {dimension_numbers = #tpu.dot_dimension_numbers<[1], [0], [0], [1], [0, 0, 1, 1], [], []>} : vector<2x32xbf16>, vector<32x128xbf16>, vector<2x128xf32> -> vector<2x128xf32>
      %24 = arith.addf %17, %23 : vector<2x128xf32>
      %c0_30 = arith.constant 0 : index
      %c0_31 = arith.constant 0 : index
      %c2 = arith.constant 2 : index
      %c0_32 = arith.constant 0 : index
      %25 = vector.load %arg6[%c0_30, %c0_31, %c2, %c0_32] : memref<2x3x8x32xf32, #tpu.memory_space<vmem>>, vector<2x1x1x32xf32>
      %26 = vector.shape_cast %25 : vector<2x1x1x32xf32> to vector<2x32xf32>
      %27 = arith.truncf %26 : vector<2x32xf32> to vector<2x32xbf16>
      %c0_33 = arith.constant 0 : index
      %c2_34 = arith.constant 2 : index
      %c0_35 = arith.constant 0 : index
      %c0_36 = arith.constant 0 : index
      %28 = vector.load %arg3[%c0_33, %c2_34, %c0_35, %c0_36] : memref<3x8x32x128xbf16, #tpu.memory_space<vmem>>, vector<1x1x32x128xbf16>
      %29 = vector.shape_cast %28 : vector<1x1x32x128xbf16> to vector<32x128xbf16>
      %cst_37 = arith.constant dense<0.000000e+00> : vector<2x128xf32>
      %30 = tpu.matmul %27, %29, %cst_37 {dimension_numbers = #tpu.dot_dimension_numbers<[1], [0], [0], [1], [0, 0, 1, 1], [], []>} : vector<2x32xbf16>, vector<32x128xbf16>, vector<2x128xf32> -> vector<2x128xf32>
      %31 = arith.addf %24, %30 : vector<2x128xf32>
      %c0_38 = arith.constant 0 : index
      %c0_39 = arith.constant 0 : index
      %c3 = arith.constant 3 : index
      %c0_40 = arith.constant 0 : index
      %32 = vector.load %arg6[%c0_38, %c0_39, %c3, %c0_40] : memref<2x3x8x32xf32, #tpu.memory_space<vmem>>, vector<2x1x1x32xf32>
      %33 = vector.shape_cast %32 : vector<2x1x1x32xf32> to vector<2x32xf32>
      %34 = arith.truncf %33 : vector<2x32xf32> to vector<2x32xbf16>
      %c0_41 = arith.constant 0 : index
      %c3_42 = arith.constant 3 : index
      %c0_43 = arith.constant 0 : index
      %c0_44 = arith.constant 0 : index
      %35 = vector.load %arg3[%c0_41, %c3_42, %c0_43, %c0_44] : memref<3x8x32x128xbf16, #tpu.memory_space<vmem>>, vector<1x1x32x128xbf16>
      %36 = vector.shape_cast %35 : vector<1x1x32x128xbf16> to vector<32x128xbf16>
      %cst_45 = arith.constant dense<0.000000e+00> : vector<2x128xf32>
      %37 = tpu.matmul %34, %36, %cst_45 {dimension_numbers = #tpu.dot_dimension_numbers<[1], [0], [0], [1], [0, 0, 1, 1], [], []>} : vector<2x32xbf16>, vector<32x128xbf16>, vector<2x128xf32> -> vector<2x128xf32>
      %38 = arith.addf %31, %37 : vector<2x128xf32>
      %c0_46 = arith.constant 0 : index
      %c0_47 = arith.constant 0 : index
      %c4 = arith.constant 4 : index
      %c0_48 = arith.constant 0 : index
      %39 = vector.load %arg6[%c0_46, %c0_47, %c4, %c0_48] : memref<2x3x8x32xf32, #tpu.memory_space<vmem>>, vector<2x1x1x32xf32>
      %40 = vector.shape_cast %39 : vector<2x1x1x32xf32> to vector<2x32xf32>
      %41 = arith.truncf %40 : vector<2x32xf32> to vector<2x32xbf16>
      %c0_49 = arith.constant 0 : index
      %c4_50 = arith.constant 4 : index
      %c0_51 = arith.constant 0 : index
      %c0_52 = arith.constant 0 : index
      %42 = vector.load %arg3[%c0_49, %c4_50, %c0_51, %c0_52] : memref<3x8x32x128xbf16, #tpu.memory_space<vmem>>, vector<1x1x32x128xbf16>
      %43 = vector.shape_cast %42 : vector<1x1x32x128xbf16> to vector<32x128xbf16>
      %cst_53 = arith.constant dense<0.000000e+00> : vector<2x128xf32>
      %44 = tpu.matmul %41, %43, %cst_53 {dimension_numbers = #tpu.dot_dimension_numbers<[1], [0], [0], [1], [0, 0, 1, 1], [], []>} : vector<2x32xbf16>, vector<32x128xbf16>, vector<2x128xf32> -> vector<2x128xf32>
      %45 = arith.addf %38, %44 : vector<2x128xf32>
      %c0_54 = arith.constant 0 : index
      %c0_55 = arith.constant 0 : index
      %c5 = arith.constant 5 : index
      %c0_56 = arith.constant 0 : index
      %46 = vector.load %arg6[%c0_54, %c0_55, %c5, %c0_56] : memref<2x3x8x32xf32, #tpu.memory_space<vmem>>, vector<2x1x1x32xf32>
      %47 = vector.shape_cast %46 : vector<2x1x1x32xf32> to vector<2x32xf32>
      %48 = arith.truncf %47 : vector<2x32xf32> to vector<2x32xbf16>
      %c0_57 = arith.constant 0 : index
      %c5_58 = arith.constant 5 : index
      %c0_59 = arith.constant 0 : index
      %c0_60 = arith.constant 0 : index
      %49 = vector.load %arg3[%c0_57, %c5_58, %c0_59, %c0_60] : memref<3x8x32x128xbf16, #tpu.memory_space<vmem>>, vector<1x1x32x128xbf16>
      %50 = vector.shape_cast %49 : vector<1x1x32x128xbf16> to vector<32x128xbf16>
      %cst_61 = arith.constant dense<0.000000e+00> : vector<2x128xf32>
      %51 = tpu.matmul %48, %50, %cst_61 {dimension_numbers = #tpu.dot_dimension_numbers<[1], [0], [0], [1], [0, 0, 1, 1], [], []>} : vector<2x32xbf16>, vector<32x128xbf16>, vector<2x128xf32> -> vector<2x128xf32>
      %52 = arith.addf %45, %51 : vector<2x128xf32>
      %c0_62 = arith.constant 0 : index
      %c0_63 = arith.constant 0 : index
      %c6 = arith.constant 6 : index
      %c0_64 = arith.constant 0 : index
      %53 = vector.load %arg6[%c0_62, %c0_63, %c6, %c0_64] : memref<2x3x8x32xf32, #tpu.memory_space<vmem>>, vector<2x1x1x32xf32>
      %54 = vector.shape_cast %53 : vector<2x1x1x32xf32> to vector<2x32xf32>
      %55 = arith.truncf %54 : vector<2x32xf32> to vector<2x32xbf16>
      %c0_65 = arith.constant 0 : index
      %c6_66 = arith.constant 6 : index
      %c0_67 = arith.constant 0 : index
      %c0_68 = arith.constant 0 : index
      %56 = vector.load %arg3[%c0_65, %c6_66, %c0_67, %c0_68] : memref<3x8x32x128xbf16, #tpu.memory_space<vmem>>, vector<1x1x32x128xbf16>
      %57 = vector.shape_cast %56 : vector<1x1x32x128xbf16> to vector<32x128xbf16>
      %cst_69 = arith.constant dense<0.000000e+00> : vector<2x128xf32>
      %58 = tpu.matmul %55, %57, %cst_69 {dimension_numbers = #tpu.dot_dimension_numbers<[1], [0], [0], [1], [0, 0, 1, 1], [], []>} : vector<2x32xbf16>, vector<32x128xbf16>, vector<2x128xf32> -> vector<2x128xf32>
      %59 = arith.addf %52, %58 : vector<2x128xf32>
      %c0_70 = arith.constant 0 : index
      %c0_71 = arith.constant 0 : index
      %c7 = arith.constant 7 : index
      %c0_72 = arith.constant 0 : index
      %60 = vector.load %arg6[%c0_70, %c0_71, %c7, %c0_72] : memref<2x3x8x32xf32, #tpu.memory_space<vmem>>, vector<2x1x1x32xf32>
      %61 = vector.shape_cast %60 : vector<2x1x1x32xf32> to vector<2x32xf32>
      %62 = arith.truncf %61 : vector<2x32xf32> to vector<2x32xbf16>
      %c0_73 = arith.constant 0 : index
      %c7_74 = arith.constant 7 : index
      %c0_75 = arith.constant 0 : index
      %c0_76 = arith.constant 0 : index
      %63 = vector.load %arg3[%c0_73, %c7_74, %c0_75, %c0_76] : memref<3x8x32x128xbf16, #tpu.memory_space<vmem>>, vector<1x1x32x128xbf16>
      %64 = vector.shape_cast %63 : vector<1x1x32x128xbf16> to vector<32x128xbf16>
      %cst_77 = arith.constant dense<0.000000e+00> : vector<2x128xf32>
      %65 = tpu.matmul %62, %64, %cst_77 {dimension_numbers = #tpu.dot_dimension_numbers<[1], [0], [0], [1], [0, 0, 1, 1], [], []>} : vector<2x32xbf16>, vector<32x128xbf16>, vector<2x128xf32> -> vector<2x128xf32>
      %66 = arith.addf %59, %65 : vector<2x128xf32>
      %c0_78 = arith.constant 0 : index
      %c1_79 = arith.constant 1 : index
      %c0_80 = arith.constant 0 : index
      %c0_81 = arith.constant 0 : index
      %67 = vector.load %arg6[%c0_78, %c1_79, %c0_80, %c0_81] : memref<2x3x8x32xf32, #tpu.memory_space<vmem>>, vector<2x1x1x32xf32>
      %68 = vector.shape_cast %67 : vector<2x1x1x32xf32> to vector<2x32xf32>
      %69 = arith.truncf %68 : vector<2x32xf32> to vector<2x32xbf16>
      %c1_82 = arith.constant 1 : index
      %c0_83 = arith.constant 0 : index
      %c0_84 = arith.constant 0 : index
      %c0_85 = arith.constant 0 : index
      %70 = vector.load %arg3[%c1_82, %c0_83, %c0_84, %c0_85] : memref<3x8x32x128xbf16, #tpu.memory_space<vmem>>, vector<1x1x32x128xbf16>
      %71 = vector.shape_cast %70 : vector<1x1x32x128xbf16> to vector<32x128xbf16>
      %cst_86 = arith.constant dense<0.000000e+00> : vector<2x128xf32>
      %72 = tpu.matmul %69, %71, %cst_86 {dimension_numbers = #tpu.dot_dimension_numbers<[1], [0], [0], [1], [0, 0, 1, 1], [], []>} : vector<2x32xbf16>, vector<32x128xbf16>, vector<2x128xf32> -> vector<2x128xf32>
      %73 = arith.addf %66, %72 : vector<2x128xf32>
      %c0_87 = arith.constant 0 : index
      %c1_88 = arith.constant 1 : index
      %c1_89 = arith.constant 1 : index
      %c0_90 = arith.constant 0 : index
      %74 = vector.load %arg6[%c0_87, %c1_88, %c1_89, %c0_90] : memref<2x3x8x32xf32, #tpu.memory_space<vmem>>, vector<2x1x1x32xf32>
      %75 = vector.shape_cast %74 : vector<2x1x1x32xf32> to vector<2x32xf32>
      %76 = arith.truncf %75 : vector<2x32xf32> to vector<2x32xbf16>
      %c1_91 = arith.constant 1 : index
      %c1_92 = arith.constant 1 : index
      %c0_93 = arith.constant 0 : index
      %c0_94 = arith.constant 0 : index
      %77 = vector.load %arg3[%c1_91, %c1_92, %c0_93, %c0_94] : memref<3x8x32x128xbf16, #tpu.memory_space<vmem>>, vector<1x1x32x128xbf16>
      %78 = vector.shape_cast %77 : vector<1x1x32x128xbf16> to vector<32x128xbf16>
      %cst_95 = arith.constant dense<0.000000e+00> : vector<2x128xf32>
      %79 = tpu.matmul %76, %78, %cst_95 {dimension_numbers = #tpu.dot_dimension_numbers<[1], [0], [0], [1], [0, 0, 1, 1], [], []>} : vector<2x32xbf16>, vector<32x128xbf16>, vector<2x128xf32> -> vector<2x128xf32>
      %80 = arith.addf %73, %79 : vector<2x128xf32>
      %c0_96 = arith.constant 0 : index
      %c1_97 = arith.constant 1 : index
      %c2_98 = arith.constant 2 : index
      %c0_99 = arith.constant 0 : index
      %81 = vector.load %arg6[%c0_96, %c1_97, %c2_98, %c0_99] : memref<2x3x8x32xf32, #tpu.memory_space<vmem>>, vector<2x1x1x32xf32>
      %82 = vector.shape_cast %81 : vector<2x1x1x32xf32> to vector<2x32xf32>
      %83 = arith.truncf %82 : vector<2x32xf32> to vector<2x32xbf16>
      %c1_100 = arith.constant 1 : index
      %c2_101 = arith.constant 2 : index
      %c0_102 = arith.constant 0 : index
      %c0_103 = arith.constant 0 : index
      %84 = vector.load %arg3[%c1_100, %c2_101, %c0_102, %c0_103] : memref<3x8x32x128xbf16, #tpu.memory_space<vmem>>, vector<1x1x32x128xbf16>
      %85 = vector.shape_cast %84 : vector<1x1x32x128xbf16> to vector<32x128xbf16>
      %cst_104 = arith.constant dense<0.000000e+00> : vector<2x128xf32>
      %86 = tpu.matmul %83, %85, %cst_104 {dimension_numbers = #tpu.dot_dimension_numbers<[1], [0], [0], [1], [0, 0, 1, 1], [], []>} : vector<2x32xbf16>, vector<32x128xbf16>, vector<2x128xf32> -> vector<2x128xf32>
      %87 = arith.addf %80, %86 : vector<2x128xf32>
      %c0_105 = arith.constant 0 : index
      %c1_106 = arith.constant 1 : index
      %c3_107 = arith.constant 3 : index
      %c0_108 = arith.constant 0 : index
      %88 = vector.load %arg6[%c0_105, %c1_106, %c3_107, %c0_108] : memref<2x3x8x32xf32, #tpu.memory_space<vmem>>, vector<2x1x1x32xf32>
      %89 = vector.shape_cast %88 : vector<2x1x1x32xf32> to vector<2x32xf32>
      %90 = arith.truncf %89 : vector<2x32xf32> to vector<2x32xbf16>
      %c1_109 = arith.constant 1 : index
      %c3_110 = arith.constant 3 : index
      %c0_111 = arith.constant 0 : index
      %c0_112 = arith.constant 0 : index
      %91 = vector.load %arg3[%c1_109, %c3_110, %c0_111, %c0_112] : memref<3x8x32x128xbf16, #tpu.memory_space<vmem>>, vector<1x1x32x128xbf16>
      %92 = vector.shape_cast %91 : vector<1x1x32x128xbf16> to vector<32x128xbf16>
      %cst_113 = arith.constant dense<0.000000e+00> : vector<2x128xf32>
      %93 = tpu.matmul %90, %92, %cst_113 {dimension_numbers = #tpu.dot_dimension_numbers<[1], [0], [0], [1], [0, 0, 1, 1], [], []>} : vector<2x32xbf16>, vector<32x128xbf16>, vector<2x128xf32> -> vector<2x128xf32>
      %94 = arith.addf %87, %93 : vector<2x128xf32>
      %c0_114 = arith.constant 0 : index
      %c1_115 = arith.constant 1 : index
      %c4_116 = arith.constant 4 : index
      %c0_117 = arith.constant 0 : index
      %95 = vector.load %arg6[%c0_114, %c1_115, %c4_116, %c0_117] : memref<2x3x8x32xf32, #tpu.memory_space<vmem>>, vector<2x1x1x32xf32>
      %96 = vector.shape_cast %95 : vector<2x1x1x32xf32> to vector<2x32xf32>
      %97 = arith.truncf %96 : vector<2x32xf32> to vector<2x32xbf16>
      %c1_118 = arith.constant 1 : index
      %c4_119 = arith.constant 4 : index
      %c0_120 = arith.constant 0 : index
      %c0_121 = arith.constant 0 : index
      %98 = vector.load %arg3[%c1_118, %c4_119, %c0_120, %c0_121] : memref<3x8x32x128xbf16, #tpu.memory_space<vmem>>, vector<1x1x32x128xbf16>
      %99 = vector.shape_cast %98 : vector<1x1x32x128xbf16> to vector<32x128xbf16>
      %cst_122 = arith.constant dense<0.000000e+00> : vector<2x128xf32>
      %100 = tpu.matmul %97, %99, %cst_122 {dimension_numbers = #tpu.dot_dimension_numbers<[1], [0], [0], [1], [0, 0, 1, 1], [], []>} : vector<2x32xbf16>, vector<32x128xbf16>, vector<2x128xf32> -> vector<2x128xf32>
      %101 = arith.addf %94, %100 : vector<2x128xf32>
      %c0_123 = arith.constant 0 : index
      %c1_124 = arith.constant 1 : index
      %c5_125 = arith.constant 5 : index
      %c0_126 = arith.constant 0 : index
      %102 = vector.load %arg6[%c0_123, %c1_124, %c5_125, %c0_126] : memref<2x3x8x32xf32, #tpu.memory_space<vmem>>, vector<2x1x1x32xf32>
      %103 = vector.shape_cast %102 : vector<2x1x1x32xf32> to vector<2x32xf32>
      %104 = arith.truncf %103 : vector<2x32xf32> to vector<2x32xbf16>
      %c1_127 = arith.constant 1 : index
      %c5_128 = arith.constant 5 : index
      %c0_129 = arith.constant 0 : index
      %c0_130 = arith.constant 0 : index
      %105 = vector.load %arg3[%c1_127, %c5_128, %c0_129, %c0_130] : memref<3x8x32x128xbf16, #tpu.memory_space<vmem>>, vector<1x1x32x128xbf16>
      %106 = vector.shape_cast %105 : vector<1x1x32x128xbf16> to vector<32x128xbf16>
      %cst_131 = arith.constant dense<0.000000e+00> : vector<2x128xf32>
      %107 = tpu.matmul %104, %106, %cst_131 {dimension_numbers = #tpu.dot_dimension_numbers<[1], [0], [0], [1], [0, 0, 1, 1], [], []>} : vector<2x32xbf16>, vector<32x128xbf16>, vector<2x128xf32> -> vector<2x128xf32>
      %108 = arith.addf %101, %107 : vector<2x128xf32>
      %c0_132 = arith.constant 0 : index
      %c1_133 = arith.constant 1 : index
      %c6_134 = arith.constant 6 : index
      %c0_135 = arith.constant 0 : index
      %109 = vector.load %arg6[%c0_132, %c1_133, %c6_134, %c0_135] : memref<2x3x8x32xf32, #tpu.memory_space<vmem>>, vector<2x1x1x32xf32>
      %110 = vector.shape_cast %109 : vector<2x1x1x32xf32> to vector<2x32xf32>
      %111 = arith.truncf %110 : vector<2x32xf32> to vector<2x32xbf16>
      %c1_136 = arith.constant 1 : index
      %c6_137 = arith.constant 6 : index
      %c0_138 = arith.constant 0 : index
      %c0_139 = arith.constant 0 : index
      %112 = vector.load %arg3[%c1_136, %c6_137, %c0_138, %c0_139] : memref<3x8x32x128xbf16, #tpu.memory_space<vmem>>, vector<1x1x32x128xbf16>
      %113 = vector.shape_cast %112 : vector<1x1x32x128xbf16> to vector<32x128xbf16>
      %cst_140 = arith.constant dense<0.000000e+00> : vector<2x128xf32>
      %114 = tpu.matmul %111, %113, %cst_140 {dimension_numbers = #tpu.dot_dimension_numbers<[1], [0], [0], [1], [0, 0, 1, 1], [], []>} : vector<2x32xbf16>, vector<32x128xbf16>, vector<2x128xf32> -> vector<2x128xf32>
      %115 = arith.addf %108, %114 : vector<2x128xf32>
      %c0_141 = arith.constant 0 : index
      %c1_142 = arith.constant 1 : index
      %c7_143 = arith.constant 7 : index
      %c0_144 = arith.constant 0 : index
      %116 = vector.load %arg6[%c0_141, %c1_142, %c7_143, %c0_144] : memref<2x3x8x32xf32, #tpu.memory_space<vmem>>, vector<2x1x1x32xf32>
      %117 = vector.shape_cast %116 : vector<2x1x1x32xf32> to vector<2x32xf32>
      %118 = arith.truncf %117 : vector<2x32xf32> to vector<2x32xbf16>
      %c1_145 = arith.constant 1 : index
      %c7_146 = arith.constant 7 : index
      %c0_147 = arith.constant 0 : index
      %c0_148 = arith.constant 0 : index
      %119 = vector.load %arg3[%c1_145, %c7_146, %c0_147, %c0_148] : memref<3x8x32x128xbf16, #tpu.memory_space<vmem>>, vector<1x1x32x128xbf16>
      %120 = vector.shape_cast %119 : vector<1x1x32x128xbf16> to vector<32x128xbf16>
      %cst_149 = arith.constant dense<0.000000e+00> : vector<2x128xf32>
      %121 = tpu.matmul %118, %120, %cst_149 {dimension_numbers = #tpu.dot_dimension_numbers<[1], [0], [0], [1], [0, 0, 1, 1], [], []>} : vector<2x32xbf16>, vector<32x128xbf16>, vector<2x128xf32> -> vector<2x128xf32>
      %122 = arith.addf %115, %121 : vector<2x128xf32>
      %c0_150 = arith.constant 0 : index
      %c2_151 = arith.constant 2 : index
      %c0_152 = arith.constant 0 : index
      %c0_153 = arith.constant 0 : index
      %123 = vector.load %arg6[%c0_150, %c2_151, %c0_152, %c0_153] : memref<2x3x8x32xf32, #tpu.memory_space<vmem>>, vector<2x1x1x32xf32>
      %124 = vector.shape_cast %123 : vector<2x1x1x32xf32> to vector<2x32xf32>
      %125 = arith.truncf %124 : vector<2x32xf32> to vector<2x32xbf16>
      %c2_154 = arith.constant 2 : index
      %c0_155 = arith.constant 0 : index
      %c0_156 = arith.constant 0 : index
      %c0_157 = arith.constant 0 : index
      %126 = vector.load %arg3[%c2_154, %c0_155, %c0_156, %c0_157] : memref<3x8x32x128xbf16, #tpu.memory_space<vmem>>, vector<1x1x32x128xbf16>
      %127 = vector.shape_cast %126 : vector<1x1x32x128xbf16> to vector<32x128xbf16>
      %cst_158 = arith.constant dense<0.000000e+00> : vector<2x128xf32>
      %128 = tpu.matmul %125, %127, %cst_158 {dimension_numbers = #tpu.dot_dimension_numbers<[1], [0], [0], [1], [0, 0, 1, 1], [], []>} : vector<2x32xbf16>, vector<32x128xbf16>, vector<2x128xf32> -> vector<2x128xf32>
      %129 = arith.addf %122, %128 : vector<2x128xf32>
      %c0_159 = arith.constant 0 : index
      %c2_160 = arith.constant 2 : index
      %c1_161 = arith.constant 1 : index
      %c0_162 = arith.constant 0 : index
      %130 = vector.load %arg6[%c0_159, %c2_160, %c1_161, %c0_162] : memref<2x3x8x32xf32, #tpu.memory_space<vmem>>, vector<2x1x1x32xf32>
      %131 = vector.shape_cast %130 : vector<2x1x1x32xf32> to vector<2x32xf32>
      %132 = arith.truncf %131 : vector<2x32xf32> to vector<2x32xbf16>
      %c2_163 = arith.constant 2 : index
      %c1_164 = arith.constant 1 : index
      %c0_165 = arith.constant 0 : index
      %c0_166 = arith.constant 0 : index
      %133 = vector.load %arg3[%c2_163, %c1_164, %c0_165, %c0_166] : memref<3x8x32x128xbf16, #tpu.memory_space<vmem>>, vector<1x1x32x128xbf16>
      %134 = vector.shape_cast %133 : vector<1x1x32x128xbf16> to vector<32x128xbf16>
      %cst_167 = arith.constant dense<0.000000e+00> : vector<2x128xf32>
      %135 = tpu.matmul %132, %134, %cst_167 {dimension_numbers = #tpu.dot_dimension_numbers<[1], [0], [0], [1], [0, 0, 1, 1], [], []>} : vector<2x32xbf16>, vector<32x128xbf16>, vector<2x128xf32> -> vector<2x128xf32>
      %136 = arith.addf %129, %135 : vector<2x128xf32>
      %c0_168 = arith.constant 0 : index
      %c2_169 = arith.constant 2 : index
      %c2_170 = arith.constant 2 : index
      %c0_171 = arith.constant 0 : index
      %137 = vector.load %arg6[%c0_168, %c2_169, %c2_170, %c0_171] : memref<2x3x8x32xf32, #tpu.memory_space<vmem>>, vector<2x1x1x32xf32>
      %138 = vector.shape_cast %137 : vector<2x1x1x32xf32> to vector<2x32xf32>
      %139 = arith.truncf %138 : vector<2x32xf32> to vector<2x32xbf16>
      %c2_172 = arith.constant 2 : index
      %c2_173 = arith.constant 2 : index
      %c0_174 = arith.constant 0 : index
      %c0_175 = arith.constant 0 : index
      %140 = vector.load %arg3[%c2_172, %c2_173, %c0_174, %c0_175] : memref<3x8x32x128xbf16, #tpu.memory_space<vmem>>, vector<1x1x32x128xbf16>
      %141 = vector.shape_cast %140 : vector<1x1x32x128xbf16> to vector<32x128xbf16>
      %cst_176 = arith.constant dense<0.000000e+00> : vector<2x128xf32>
      %142 = tpu.matmul %139, %141, %cst_176 {dimension_numbers = #tpu.dot_dimension_numbers<[1], [0], [0], [1], [0, 0, 1, 1], [], []>} : vector<2x32xbf16>, vector<32x128xbf16>, vector<2x128xf32> -> vector<2x128xf32>
      %143 = arith.addf %136, %142 : vector<2x128xf32>
      %c0_177 = arith.constant 0 : index
      %c2_178 = arith.constant 2 : index
      %c3_179 = arith.constant 3 : index
      %c0_180 = arith.constant 0 : index
      %144 = vector.load %arg6[%c0_177, %c2_178, %c3_179, %c0_180] : memref<2x3x8x32xf32, #tpu.memory_space<vmem>>, vector<2x1x1x32xf32>
      %145 = vector.shape_cast %144 : vector<2x1x1x32xf32> to vector<2x32xf32>
      %146 = arith.truncf %145 : vector<2x32xf32> to vector<2x32xbf16>
      %c2_181 = arith.constant 2 : index
      %c3_182 = arith.constant 3 : index
      %c0_183 = arith.constant 0 : index
      %c0_184 = arith.constant 0 : index
      %147 = vector.load %arg3[%c2_181, %c3_182, %c0_183, %c0_184] : memref<3x8x32x128xbf16, #tpu.memory_space<vmem>>, vector<1x1x32x128xbf16>
      %148 = vector.shape_cast %147 : vector<1x1x32x128xbf16> to vector<32x128xbf16>
      %cst_185 = arith.constant dense<0.000000e+00> : vector<2x128xf32>
      %149 = tpu.matmul %146, %148, %cst_185 {dimension_numbers = #tpu.dot_dimension_numbers<[1], [0], [0], [1], [0, 0, 1, 1], [], []>} : vector<2x32xbf16>, vector<32x128xbf16>, vector<2x128xf32> -> vector<2x128xf32>
      %150 = arith.addf %143, %149 : vector<2x128xf32>
      %c0_186 = arith.constant 0 : index
      %c2_187 = arith.constant 2 : index
      %c4_188 = arith.constant 4 : index
      %c0_189 = arith.constant 0 : index
      %151 = vector.load %arg6[%c0_186, %c2_187, %c4_188, %c0_189] : memref<2x3x8x32xf32, #tpu.memory_space<vmem>>, vector<2x1x1x32xf32>
      %152 = vector.shape_cast %151 : vector<2x1x1x32xf32> to vector<2x32xf32>
      %153 = arith.truncf %152 : vector<2x32xf32> to vector<2x32xbf16>
      %c2_190 = arith.constant 2 : index
      %c4_191 = arith.constant 4 : index
      %c0_192 = arith.constant 0 : index
      %c0_193 = arith.constant 0 : index
      %154 = vector.load %arg3[%c2_190, %c4_191, %c0_192, %c0_193] : memref<3x8x32x128xbf16, #tpu.memory_space<vmem>>, vector<1x1x32x128xbf16>
      %155 = vector.shape_cast %154 : vector<1x1x32x128xbf16> to vector<32x128xbf16>
      %cst_194 = arith.constant dense<0.000000e+00> : vector<2x128xf32>
      %156 = tpu.matmul %153, %155, %cst_194 {dimension_numbers = #tpu.dot_dimension_numbers<[1], [0], [0], [1], [0, 0, 1, 1], [], []>} : vector<2x32xbf16>, vector<32x128xbf16>, vector<2x128xf32> -> vector<2x128xf32>
      %157 = arith.addf %150, %156 : vector<2x128xf32>
      %c0_195 = arith.constant 0 : index
      %c2_196 = arith.constant 2 : index
      %c5_197 = arith.constant 5 : index
      %c0_198 = arith.constant 0 : index
      %158 = vector.load %arg6[%c0_195, %c2_196, %c5_197, %c0_198] : memref<2x3x8x32xf32, #tpu.memory_space<vmem>>, vector<2x1x1x32xf32>
      %159 = vector.shape_cast %158 : vector<2x1x1x32xf32> to vector<2x32xf32>
      %160 = arith.truncf %159 : vector<2x32xf32> to vector<2x32xbf16>
      %c2_199 = arith.constant 2 : index
      %c5_200 = arith.constant 5 : index
      %c0_201 = arith.constant 0 : index
      %c0_202 = arith.constant 0 : index
      %161 = vector.load %arg3[%c2_199, %c5_200, %c0_201, %c0_202] : memref<3x8x32x128xbf16, #tpu.memory_space<vmem>>, vector<1x1x32x128xbf16>
      %162 = vector.shape_cast %161 : vector<1x1x32x128xbf16> to vector<32x128xbf16>
      %cst_203 = arith.constant dense<0.000000e+00> : vector<2x128xf32>
      %163 = tpu.matmul %160, %162, %cst_203 {dimension_numbers = #tpu.dot_dimension_numbers<[1], [0], [0], [1], [0, 0, 1, 1], [], []>} : vector<2x32xbf16>, vector<32x128xbf16>, vector<2x128xf32> -> vector<2x128xf32>
      %164 = arith.addf %157, %163 : vector<2x128xf32>
      %c0_204 = arith.constant 0 : index
      %c2_205 = arith.constant 2 : index
      %c6_206 = arith.constant 6 : index
      %c0_207 = arith.constant 0 : index
      %165 = vector.load %arg6[%c0_204, %c2_205, %c6_206, %c0_207] : memref<2x3x8x32xf32, #tpu.memory_space<vmem>>, vector<2x1x1x32xf32>
      %166 = vector.shape_cast %165 : vector<2x1x1x32xf32> to vector<2x32xf32>
      %167 = arith.truncf %166 : vector<2x32xf32> to vector<2x32xbf16>
      %c2_208 = arith.constant 2 : index
      %c6_209 = arith.constant 6 : index
      %c0_210 = arith.constant 0 : index
      %c0_211 = arith.constant 0 : index
      %168 = vector.load %arg3[%c2_208, %c6_209, %c0_210, %c0_211] : memref<3x8x32x128xbf16, #tpu.memory_space<vmem>>, vector<1x1x32x128xbf16>
      %169 = vector.shape_cast %168 : vector<1x1x32x128xbf16> to vector<32x128xbf16>
      %cst_212 = arith.constant dense<0.000000e+00> : vector<2x128xf32>
      %170 = tpu.matmul %167, %169, %cst_212 {dimension_numbers = #tpu.dot_dimension_numbers<[1], [0], [0], [1], [0, 0, 1, 1], [], []>} : vector<2x32xbf16>, vector<32x128xbf16>, vector<2x128xf32> -> vector<2x128xf32>
      %171 = arith.addf %164, %170 : vector<2x128xf32>
      %c0_213 = arith.constant 0 : index
      %c2_214 = arith.constant 2 : index
      %c7_215 = arith.constant 7 : index
      %c0_216 = arith.constant 0 : index
      %172 = vector.load %arg6[%c0_213, %c2_214, %c7_215, %c0_216] : memref<2x3x8x32xf32, #tpu.memory_space<vmem>>, vector<2x1x1x32xf32>
      %173 = vector.shape_cast %172 : vector<2x1x1x32xf32> to vector<2x32xf32>
      %174 = arith.truncf %173 : vector<2x32xf32> to vector<2x32xbf16>
      %c2_217 = arith.constant 2 : index
      %c7_218 = arith.constant 7 : index
      %c0_219 = arith.constant 0 : index
      %c0_220 = arith.constant 0 : index
      %175 = vector.load %arg3[%c2_217, %c7_218, %c0_219, %c0_220] : memref<3x8x32x128xbf16, #tpu.memory_space<vmem>>, vector<1x1x32x128xbf16>
      %176 = vector.shape_cast %175 : vector<1x1x32x128xbf16> to vector<32x128xbf16>
      %cst_221 = arith.constant dense<0.000000e+00> : vector<2x128xf32>
      %177 = tpu.matmul %174, %176, %cst_221 {dimension_numbers = #tpu.dot_dimension_numbers<[1], [0], [0], [1], [0, 0, 1, 1], [], []>} : vector<2x32xbf16>, vector<32x128xbf16>, vector<2x128xf32> -> vector<2x128xf32>
      %178 = arith.addf %171, %177 : vector<2x128xf32>
      %c0_222 = arith.constant 0 : index
      %c0_223 = arith.constant 0 : index
      %179 = vector.load %arg4[%c0_222, %c0_223] : memref<1x128xf32, #tpu.memory_space<vmem>>, vector<1x128xf32>
      %180 = vector.broadcast %179 : vector<1x128xf32> to vector<2x128xf32>
      %181 = arith.addf %178, %180 : vector<2x128xf32>
      %c0_224 = arith.constant 0 : index
      %c0_225 = arith.constant 0 : index
      %182 = vector.load %arg5[%c0_224, %c0_225] : memref<2x128xf32, #tpu.memory_space<vmem>>, vector<2x128xf32>
      tpu.vector_store %arg5[%c0_224, %c0_225], %181 {strides = array<i32>} : memref<2x128xf32, #tpu.memory_space<vmem>>, vector<2x128xf32>,
    } else {
    }
    return
  }
  func.func @transform_0(%arg0: i32, %arg1: i32) -> (i32, i32, i32, i32) {
    %c0_i32 = arith.constant 0 : i32
    %c0_i32_0 = arith.constant 0 : i32
    %c0_i32_1 = arith.constant 0 : i32
    return %arg0, %c0_i32, %arg1, %c0_i32_0 : i32, i32, i32, i32
  }
  func.func @transform_1(%arg0: i32, %arg1: i32) -> (i32, i32, i32, i32) {
    %c0_i32 = arith.constant 0 : i32
    %c0_i32_0 = arith.constant 0 : i32
    %c0_i32_1 = arith.constant 0 : i32
    %c0_i32_2 = arith.constant 0 : i32
    %c0_i32_3 = arith.constant 0 : i32
    return %c0_i32, %c0_i32_0, %c0_i32_1, %c0_i32_2 : i32, i32, i32, i32
  }
  func.func @transform_2(%arg0: i32, %arg1: i32) -> (i32, i32) {
    %c0_i32 = arith.constant 0 : i32
    %c0_i32_0 = arith.constant 0 : i32
    %c0_i32_1 = arith.constant 0 : i32
    return %c0_i32, %c0_i32_0 : i32, i32
  }
  func.func @transform_3(%arg0: i32, %arg1: i32) -> (i32, i32) {
    %c0_i32 = arith.constant 0 : i32
    %c0_i32_0 = arith.constant 0 : i32
    return %arg0, %c0_i32 : i32, i32
  }
}

</mosaic_0001>

<llo_original>
// kernel: tpu_custom_call.1
$region0: #{tpu_custom_call.1}
  #allocation0 [shape = 'u32[]', space=smem, size = 0x4, offset = 0x4, fixed_abs, tag = 'smem constant byte address 0x4 - core index']
  #allocation1 [shape = 'u32[144,128]{1,0:T(1,128)}', space=vmem, size = 0x12000, scoped, tag = 'internal scratch']
  #allocation2 [shape = 'f32[2,3,8,32]{3,2,1,0:T(8,128)}', space=vmem, size = 0x6000, scoped, tag = 'scratch operand']
  %s0 = inlined_call_operand.hbm [shape: f32[2,3,32,32], index: 0, kind: input, shape index: {}]
  %s1 = inlined_call_operand.hbm [shape: bf16[3,8,32,128], index: 1, kind: input, shape index: {}]
  %s2 = inlined_call_operand.vmem [shape: f32[1,128], index: 2, kind: input, shape index: {}]
  %s3 = inlined_call_operand.hbm [shape: f32[2,128], index: 3, kind: output, shape index: {}]
  %s4 = sld [smem:[#allocation0]]
  $region61: #{tpu_custom_call.1} parent=0
    _
  %s6 = ssub.s32 1, %s4
  %s7 = scalar_select 0, %s6, %s4
  $region1: #{tpu_custom_call.1} parent=0
    #allocation3 [shape = 'u8[49152]{0}', space=vmem, size = 0xc000, scoped, tag = 'input window, operand 0']
    #allocation4 [shape = 's32[2]{0}', space=sflag, size = 0x8, scoped, tag = 'scoped memory for tpu_custom_call.1']
    #allocation5 [shape = 's32[2]{0}', space=sflag, size = 0x8, scoped, tag = 'scoped memory for tpu_custom_call.1']
    #allocation6 [shape = 'u8[196608]{0}', space=vmem, size = 0x30000, scoped, tag = 'input window, operand 1, single buffered']
    #allocation7 [shape = 's32[1]{0}', space=sflag, size = 0x4, scoped, tag = 'scoped memory for tpu_custom_call.1']
    #allocation8 [shape = 'u8[1024]{0}', space=vmem, size = 0x400, scoped, tag = 'output window, operand 0, single buffered']
    %8 = vsyncpa [#allocation4], 0
    %s9 = scalar_lea.sflag [#allocation4], 1
    %10 = vsyncpa %s9, 0
    %11 = vsyncpa [#allocation7], 0
    %12 = vsyncpa [#allocation5], 0
    loop: start=0, step=1, limit=6
    $region2: #{tpu_custom_call.1} parent=1 // loop_pre_header
      _
    $region3: #{tpu_custom_call.1} parent=1 // loop_header
      %s14 = sphi 0, %s18
      %p15 = scmp.ge.s32.totalorder %s14, 6
      %s21 = sphi 0, %s33
      %s22 = sphi 0, %s29
      %s23 = sphi 0, %s21
      %s24 = sphi 0, %s22
      %s25 = sphi 0, %s23
      %s26 = sphi 0, %s24
      %s38 = sphi 0, %s40
      %s41 = sphi 0, %s38
      %s42 = sphi 0, %s41
      %s58 = sphi 0, %s42
      %s62 = sphi 0, %s62
      %s64 = sphi 0, %s62
      %s65 = sphi 0, %s64
      %s79 = sphi 0, %s65
      %s83 = sphi 0, %s83
      %s85 = sphi 0, %s83
      %s86 = sphi 0, %s85
      %s100 = sphi 0, %s86
      %s106 = sphi 0, %s108
      %s109 = sphi 0, %s106
      %s110 = sphi 0, %s109
      %s126 = sphi 0, %s110
    $region4: #{tpu_custom_call.1} parent=1 // loop_header_branch
      %17 = sbr.rel (%p15) target = $region8
    $region5: #{tpu_custom_call.1} parent=1 // loop_body
      %s19 = ssub.s32 %s14, 1
      %s20 = ssub.s32 %s14, 2
      %s27 = sadd.s32 1, %s22
      %p28 = scmp.ge.s32.totalorder %s27, 4
      %s29 = scalar_select %p28, 0, %s27
      %s30 = sadd.s32 1, %s21
      %s31 = scalar_select %p28, %s30, %s21
      %p32 = scmp.ge.s32.totalorder %s31, 1
      %s33 = scalar_select %p32, 0, %s31
      %s34 = ssub.s32 %s21, %s33
      %s35 = ssub.s32 %s22, %s29
      %s36 = sor.u32 %s34, %s35
      %p37 = scmp.eq.s32.totalorder %s36, 0
      %s39 = sadd.s32 %s38, 1
      %s40 = scalar_select %p37, %s38, %s39
      %p43 = pneg %p37
      %p44 = scmp.eq.s32.totalorder %s14, 3
      %p45 = por %p43, %p44
      %p46 = scmp.ne.s32.totalorder %s38, %s41
      %p47 = scmp.eq.s32.totalorder %s14, 0
      %p48 = por %p46, %p47
      %p49 = scmp.ne.s32.totalorder %s38, %s41
      %p50 = scmp.eq.s32.totalorder %s19, 3
      %p51 = por %p49, %p50
      %p52 = scmp.ne.s32.totalorder %s41, %s42
      %p53 = scmp.eq.s32.totalorder %s19, 0
      %p54 = por %p52, %p53
      %p55 = scmp.ne.s32.totalorder %s41, %s42
      %p56 = scmp.eq.s32.totalorder %s20, 3
      %p57 = por %p55, %p56
      %p59 = scmp.ne.s32.totalorder %s42, %s58
      %p60 = scmp.eq.s32.totalorder %s20, 0
      %p61 = por %p59, %p60
      %s63 = sadd.s32 %s62, 1
      %p66 = scmp.eq.s32.totalorder %s14, 3
      %p67 = scmp.ne.s32.totalorder %s62, %s64
      %p68 = scmp.eq.s32.totalorder %s14, 0
      %p69 = por %p67, %p68
      %p70 = scmp.ne.s32.totalorder %s62, %s64
      %p71 = scmp.eq.s32.totalorder %s19, 3
      %p72 = por %p70, %p71
      %p73 = scmp.ne.s32.totalorder %s64, %s65
      %p74 = scmp.eq.s32.totalorder %s19, 0
      %p75 = por %p73, %p74
      %p76 = scmp.ne.s32.totalorder %s64, %s65
      %p77 = scmp.eq.s32.totalorder %s20, 3
      %p78 = por %p76, %p77
      %p80 = scmp.ne.s32.totalorder %s65, %s79
      %p81 = scmp.eq.s32.totalorder %s20, 0
      %p82 = por %p80, %p81
      %s84 = sadd.s32 %s83, 1
      %p87 = scmp.eq.s32.totalorder %s14, 3
      %p88 = scmp.ne.s32.totalorder %s83, %s85
      %p89 = scmp.eq.s32.totalorder %s14, 0
      %p90 = por %p88, %p89
      %p91 = scmp.ne.s32.totalorder %s83, %s85
      %p92 = scmp.eq.s32.totalorder %s19, 3
      %p93 = por %p91, %p92
      %p94 = scmp.ne.s32.totalorder %s85, %s86
      %p95 = scmp.eq.s32.totalorder %s19, 0
      %p96 = por %p94, %p95
      %p97 = scmp.ne.s32.totalorder %s85, %s86
      %p98 = scmp.eq.s32.totalorder %s20, 3
      %p99 = por %p97, %p98
      %p101 = scmp.ne.s32.totalorder %s86, %s100
      %p102 = scmp.eq.s32.totalorder %s20, 0
      %p103 = por %p101, %p102
      %s104 = ssub.s32 %s21, %s33
      %p105 = scmp.eq.s32.totalorder %s104, 0
      %s107 = sadd.s32 %s106, 1
      %s108 = scalar_select %p105, %s106, %s107
      %p111 = pneg %p105
      %p112 = scmp.eq.s32.totalorder %s14, 3
      %p113 = por %p111, %p112
      %p114 = scmp.ne.s32.totalorder %s106, %s109
      %p115 = scmp.eq.s32.totalorder %s14, 0
      %p116 = por %p114, %p115
      %p117 = scmp.ne.s32.totalorder %s106, %s109
      %p118 = scmp.eq.s32.totalorder %s19, 3
      %p119 = por %p117, %p118
      %p120 = scmp.ne.s32.totalorder %s109, %s110
      %p121 = scmp.eq.s32.totalorder %s19, 0
      %p122 = por %p120, %p121
      %p123 = scmp.ne.s32.totalorder %s109, %s110
      %p124 = scmp.eq.s32.totalorder %s20, 3
      %p125 = por %p123, %p124
      %p127 = scmp.ne.s32.totalorder %s110, %s126
      %p128 = scmp.eq.s32.totalorder %s20, 0
      %p129 = por %p127, %p128
      %p130 = scmp.le.s32.totalorder 1, %s14
      %p131 = scmp.lt.s32.totalorder %s14, 5
      %p132 = pnand %p130, %p131
      %p133 = pneg %p132
      // Predicated region
      $region9: #{tpu_custom_call.1} parent=5 // pred_check
        _
      $region10: #{tpu_custom_call.1} parent=5 // pred_check_branch
        %135 = sbr.rel (%p132) target = $region12
      $region11: #{tpu_custom_call.1} parent=5 // pred_region
        %s136 = ssub.s32 %s14, 1
        // Predicated region
        $region13: #{tpu_custom_call.1} parent=11 // pred_check
          %p137 = pneg %p75
        $region14: #{tpu_custom_call.1} parent=11 // pred_check_branch
          %139 = sbr.rel (%p137) target = $region16
        $region15: #{tpu_custom_call.1} parent=11 // pred_region
          %s141 = ssub.s32 6144, 6144
          %142 = vsyncadd [#allocation7], %s141
          %s143 = sshll.u32 [#allocation6], 4
          %s144 = int_to_ptr.vmem [resolvable:$true] %s143
          %149 = dma.hbm_to_vmem [thread:$0]  %s1, 6144, %s144, [#allocation7], 64, 64, 4
        $region16: #{tpu_custom_call.1} parent=11 // pred_fallthru
          _
        // Predicated region
        $region17: #{tpu_custom_call.1} parent=11 // pred_check
          %p150 = pneg %p96
        $region18: #{tpu_custom_call.1} parent=11 // pred_check_branch
          %152 = sbr.rel (%p150) target = $region20
        $region19: #{tpu_custom_call.1} parent=11 // pred_region
          _
        $region20: #{tpu_custom_call.1} parent=11 // pred_fallthru
          _
      $region12: #{tpu_custom_call.1} parent=5 // pred_fallthru
        _
      %p153 = scmp.lt.s32.totalorder %s14, 4
      // Predicated region
      $region21: #{tpu_custom_call.1} parent=5 // pred_check
        %p154 = pneg %p153
      $region22: #{tpu_custom_call.1} parent=5 // pred_check_branch
        %156 = sbr.rel (%p154) target = $region24
      $region23: #{tpu_custom_call.1} parent=5 // pred_region
        // Predicated region
        $region25: #{tpu_custom_call.1} parent=23 // pred_check
          %p157 = pneg %p48
        $region26: #{tpu_custom_call.1} parent=23 // pred_check_branch
          %159 = sbr.rel (%p157) target = $region28
        $region27: #{tpu_custom_call.1} parent=23 // pred_region
          %s160 = sand.u32 %s38, 1
          %s161 = scalar_lea.sflag [#allocation4], %s160
          %s162 = sand.u32 %s38, 1
          %s163 = smul.addr %s162, 48
          %s164 = scalar_lea.vmem [#allocation3], %s163
          %s165 = smul.u32 2, %s21
          %s167 = ssub.s32 768, 768
          %168 = vsyncadd %s161, %s167
          %s169 = smul.addr %s165, 12
          %s170 = sadd.s32 %s22, %s169
          %s171 = smul.addr %s170, 128
          %s172 = scalar_lea.hbm %s0, %s171
          %s173 = sshll.u32 %s164, 4
          %s174 = int_to_ptr.vmem [resolvable:$true] %s173
          %179 = dma.hbm_to_vmem [thread:$0]  %s172, 768, %s174, %s161, 512, 128, 8
        $region28: #{tpu_custom_call.1} parent=23 // pred_fallthru
          _
      $region24: #{tpu_custom_call.1} parent=5 // pred_fallthru
        _
      %p180 = scmp.le.s32.totalorder 1, %s14
      %p181 = scmp.lt.s32.totalorder %s14, 5
      %p182 = pnand %p180, %p181
      %p183 = pneg %p182
      // Predicated region
      $region29: #{tpu_custom_call.1} parent=5 // pred_check
        _
      $region30: #{tpu_custom_call.1} parent=5 // pred_check_branch
        %185 = sbr.rel (%p182) target = $region32
      $region31: #{tpu_custom_call.1} parent=5 // pred_region
        %s186 = ssub.s32 %s14, 1
        %s187 = sand.u32 %s41, 1
        %s188 = scalar_lea.sflag [#allocation4], %s187
        %s189 = sand.u32 %s41, 1
        %s190 = smul.addr %s189, 48
        %s191 = scalar_lea.vmem [#allocation3], %s190
        // Predicated region
        $region33: #{tpu_custom_call.1} parent=31 // pred_check
          %p192 = pneg %p54
        $region34: #{tpu_custom_call.1} parent=31 // pred_check_branch
          %194 = sbr.rel (%p192) target = $region36
        $region35: #{tpu_custom_call.1} parent=31 // pred_region
          %195 = dma.done %s188, 768
        $region36: #{tpu_custom_call.1} parent=31 // pred_fallthru
          _
        // Predicated region
        $region37: #{tpu_custom_call.1} parent=31 // pred_check
          %p196 = pneg %p75
        $region38: #{tpu_custom_call.1} parent=31 // pred_check_branch
          %198 = sbr.rel (%p196) target = $region40
        $region39: #{tpu_custom_call.1} parent=31 // pred_region
          %199 = dma.done [#allocation7], 6144
        $region40: #{tpu_custom_call.1} parent=31 // pred_fallthru
          _
        %s200 = sand.u32 %s41, 1
        %s201 = scalar_lea.sflag [#allocation4], %s200
        %s202 = sand.u32 %s41, 1
        %s203 = smul.addr %s202, 48
        %s204 = scalar_lea.vmem [#allocation3], %s203
        %p205 = pneg %p54
        %p206 = pneg %p51
        %p207 = pneg %p75
        %p208 = pneg %p72
        %p209 = pneg %p96
        %p210 = pneg %p93
        %p211 = pneg %p122
        %p212 = pneg %p119
        %s213 = smul.u32 2, %s23
        %p215 = scmp.eq.s32.totalorder %s24, 0
        // Predicated region
        $region41: #{tpu_custom_call.1} parent=31 // pred_check
          %p216 = pneg %p215
        $region42: #{tpu_custom_call.1} parent=31 // pred_check_branch
          %218 = sbr.rel (%p216) target = $region44
        $region43: #{tpu_custom_call.1} parent=31 // pred_region
          %vm219 = vcmask 261120
          %220 = vst.msk [vmem:[#allocation2] sm:$0xff] %vm219, 0.0
          %221 = vst.msk [vmem:[#allocation2 + $0x8] sm:$0xff] %vm219, 0.0
          %222 = vst.msk [vmem:[#allocation2 + $0x10] sm:$0xff] %vm219, 0.0
          %223 = vst.msk [vmem:[#allocation2 + $0x18] sm:$0xff] %vm219, 0.0
          %224 = vst.msk [vmem:[#allocation2 + $0x20] sm:$0xff] %vm219, 0.0
          %225 = vst.msk [vmem:[#allocation2 + $0x28] sm:$0xff] %vm219, 0.0
        $region44: #{tpu_custom_call.1} parent=31 // pred_fallthru
          _
        %v226 = vld [vmem:[%s191] sm:$0xff]
        %v227 = vld [vmem:[%s191 + $0x8] sm:$0xff]
        %v228 = vld [vmem:[%s191 + $0x10] sm:$0xff]
        %v229 = vld [vmem:[%s191 + $0x18] sm:$0xff]
        %v230 = vld [vmem:[%s191 + $0x20] sm:$0xff]
        %v231 = vld [vmem:[%s191 + $0x28] sm:$0xff]
        %v232 = vld [vmem:[#allocation2] sm:$0xff]
        %v233 = vld [vmem:[#allocation2 + $0x8] sm:$0xff]
        %v234 = vld [vmem:[#allocation2 + $0x10] sm:$0xff]
        %v235 = vld [vmem:[#allocation2 + $0x18] sm:$0xff]
        %v236 = vld [vmem:[#allocation2 + $0x20] sm:$0xff]
        %v237 = vld [vmem:[#allocation2 + $0x28] sm:$0xff]
        %v238 = vadd.f32 %v232, %v226
        %v239 = vadd.f32 %v233, %v227
        %v240 = vadd.f32 %v234, %v228
        %v241 = vadd.f32 %v235, %v229
        %v242 = vadd.f32 %v236, %v230
        %v243 = vadd.f32 %v237, %v231
        %vm244 = vcmask 261120
        %245 = vst.msk [vmem:[#allocation2] sm:$0xff] %vm244, %v238
        %246 = vst.msk [vmem:[#allocation2 + $0x8] sm:$0xff] %vm244, %v239
        %247 = vst.msk [vmem:[#allocation2 + $0x10] sm:$0xff] %vm244, %v240
        %248 = vst.msk [vmem:[#allocation2 + $0x18] sm:$0xff] %vm244, %v241
        %249 = vst.msk [vmem:[#allocation2 + $0x20] sm:$0xff] %vm244, %v242
        %250 = vst.msk [vmem:[#allocation2 + $0x28] sm:$0xff] %vm244, %v243
        %p251 = scmp.eq.s32.totalorder %s24, 3
        // Predicated region
        $region45: #{tpu_custom_call.1} parent=31 // pred_check
          %p252 = pneg %p251
        $region46: #{tpu_custom_call.1} parent=31 // pred_check_branch
          %254 = sbr.rel (%p252) target = $region48
        $region47: #{tpu_custom_call.1} parent=31 // pred_region
          %v255 = vld [vmem:[#allocation2] sm:$0x1]
          %v256 = vld [vmem:[#allocation2 + $0x18] sm:$0x1]
          %v257 = vpack.c.bf16 %v255, %v255
          %v258 = vpack.c.bf16 %v256, %v256
          %v259 = vld [vmem:[#allocation6] sm:$0xf]
          %v260 = vld [vmem:[#allocation6 + $0x4] sm:$0xf]
          %v261 = vld [vmem:[#allocation6 + $0x8] sm:$0xf]
          %v262 = vld [vmem:[#allocation6 + $0xc] sm:$0xf]
          %v263 = vld [vmem:[#allocation2 + $0x1] sm:$0x1]
          %v264 = vld [vmem:[#allocation2 + $0x19] sm:$0x1]
          %v265 = vpack.c.bf16 %v263, %v263
          %v266 = vpack.c.bf16 %v264, %v264
          %s267 = scalar_lea.vmem [#allocation6], 16
          %v268 = vld [vmem:[%s267] sm:$0xf]
          %v269 = vld [vmem:[%s267 + $0x4] sm:$0xf]
          %v270 = vld [vmem:[%s267 + $0x8] sm:$0xf]
          %v271 = vld [vmem:[%s267 + $0xc] sm:$0xf]
          %v274 = vunpack.c.l.b16 %v265
          %v275 = vunpack.c.l.b16 %v266
          %v276 = vrot.slane %v275, 7
          %vm277 = vcmask 1041409
          %v278 = vsel %vm277, %v276, %v274
          %v279 = vpack.c.b16 %v278, %v278
          %v284 = vunpack.c.l.b16 %v268
          %v285 = vunpack.c.l.b16 %v269
          %v286 = vunpack.c.l.b16 %v270
          %v287 = vunpack.c.l.b16 %v271
          %v288 = vpack.c.b16 %v285, %v284
          %v289 = vpack.c.b16 %v287, %v286
          %v293 = vsel %vm244, %v279, 0
          %295 = vmatprep.subr.bf16.mxu0 0
          %296 = vmatpush1.bf16.msra.mxu0 %v288
          %297 = vmatprep.subr.bf16.mxu0 0
          %298 = vmatpush1.bf16.msra.mxu0 %v289
          %299 = vmatprep.subr.bf16.mxu0 0
          %300 = vmatpush1.bf16.msra.mxu0 0
          %301 = vmatprep.subr.bf16.mxu0 0
          %302 = vmatpush1.bf16.msra.mxu0 0
          %303 = vmatprep.subr.bf16.mxu0 0
          %304 = vmatpush1.bf16.msra.mxu0 0
          %305 = vmatprep.subr.bf16.mxu0 0
          %306 = vmatpush1.bf16.msra.mxu0 0
          %307 = vmatprep.subr.bf16.mxu0 0
          %308 = vmatpush1.bf16.msra.mxu0 0
          %309 = vmatprep.subr.bf16.mxu0 0
          %310 = vmatpush1.bf16.msra.mxu0 0
          %311 = vmatprep.subr.bf16.mxu0 0
          %312 = vmatpush1.bf16.msra.mxu0 0
          %313 = vmatprep.subr.bf16.mxu0 0
          %314 = vmatpush1.bf16.msra.mxu0 0
          %315 = vmatprep.subr.bf16.mxu0 0
          %316 = vmatpush1.bf16.msra.mxu0 0
          %317 = vmatprep.subr.bf16.mxu0 0
          %318 = vmatpush1.bf16.msra.mxu0 0
          %319 = vmatprep.subr.bf16.mxu0 0
          %320 = vmatpush1.bf16.msra.mxu0 0
          %321 = vmatprep.subr.bf16.mxu0 0
          %322 = vmatpush1.bf16.msra.mxu0 0
          %323 = vmatprep.subr.bf16.mxu0 0
          %324 = vmatpush1.bf16.msra.mxu0 0
          %325 = vmatprep.subr.bf16.mxu0 0
          %326 = vmatpush1.bf16.msra.mxu0 0
          %327 = vmatprep.mubr.bf16.mxu0 0
          %328 = vmatmul.mubr.bf16.gmra.mrb[0].mxu0 %v293
          %v329 = vpop.f32.mrb[0].mxu0
          %v330 = vadd.f32 0.0, %v329
          %v331 = vpop.f32.mrb[0].mxu0
          %v332 = vpop.f32.mrb[0].mxu0
          %v333 = vpop.f32.mrb[0].mxu0
          %334 = vdwg.mxu0
          %v337 = vunpack.c.l.b16 %v257
          %v338 = vunpack.c.l.b16 %v258
          %v339 = vrot.slane %v338, 7
          %v340 = vsel %vm277, %v339, %v337
          %v341 = vpack.c.b16 %v340, %v340
          %v346 = vunpack.c.l.b16 %v259
          %v347 = vunpack.c.l.b16 %v260
          %v348 = vunpack.c.l.b16 %v261
          %v349 = vunpack.c.l.b16 %v262
          %v350 = vpack.c.b16 %v347, %v346
          %v351 = vpack.c.b16 %v349, %v348
          %v355 = vsel %vm244, %v341, 0
          %357 = vmatprep.subr.bf16.mxu0 0
          %358 = vmatpush1.bf16.msra.mxu0 %v350
          %359 = vmatprep.subr.bf16.mxu0 0
          %360 = vmatpush1.bf16.msra.mxu0 %v351
          %361 = vmatprep.subr.bf16.mxu0 0
          %362 = vmatpush1.bf16.msra.mxu0 0
          %363 = vmatprep.subr.bf16.mxu0 0
          %364 = vmatpush1.bf16.msra.mxu0 0
          %365 = vmatprep.subr.bf16.mxu0 0
          %366 = vmatpush1.bf16.msra.mxu0 0
          %367 = vmatprep.subr.bf16.mxu0 0
          %368 = vmatpush1.bf16.msra.mxu0 0
          %369 = vmatprep.subr.bf16.mxu0 0
          %370 = vmatpush1.bf16.msra.mxu0 0
          %371 = vmatprep.subr.bf16.mxu0 0
          %372 = vmatpush1.bf16.msra.mxu0 0
          %373 = vmatprep.subr.bf16.mxu0 0
          %374 = vmatpush1.bf16.msra.mxu0 0
          %375 = vmatprep.subr.bf16.mxu0 0
          %376 = vmatpush1.bf16.msra.mxu0 0
          %377 = vmatprep.subr.bf16.mxu0 0
          %378 = vmatpush1.bf16.msra.mxu0 0
          %379 = vmatprep.subr.bf16.mxu0 0
          %380 = vmatpush1.bf16.msra.mxu0 0
          %381 = vmatprep.subr.bf16.mxu0 0
          %382 = vmatpush1.bf16.msra.mxu0 0
          %383 = vmatprep.subr.bf16.mxu0 0
          %384 = vmatpush1.bf16.msra.mxu0 0
          %385 = vmatprep.subr.bf16.mxu0 0
          %386 = vmatpush1.bf16.msra.mxu0 0
          %387 = vmatprep.subr.bf16.mxu0 0
          %388 = vmatpush1.bf16.msra.mxu0 0
          %389 = vmatprep.mubr.bf16.mxu0 0
          %390 = vmatmul.mubr.bf16.gmra.mrb[0].mxu0 %v355
          %v391 = vpop.f32.mrb[0].mxu0
          %v392 = vadd.f32 %v330, %v391
          %v393 = vpop.f32.mrb[0].mxu0
          %v394 = vpop.f32.mrb[0].mxu0
          %v395 = vpop.f32.mrb[0].mxu0
          %396 = vdwg.mxu0
          %v397 = vld [vmem:[#allocation2 + $0x2] sm:$0x1]
          %v398 = vld [vmem:[#allocation2 + $0x1a] sm:$0x1]
          %v399 = vpack.c.bf16 %v397, %v397
          %v400 = vpack.c.bf16 %v398, %v398
          %s401 = scalar_lea.vmem [#allocation6], 32
          %v402 = vld [vmem:[%s401] sm:$0xf]
          %v403 = vld [vmem:[%s401 + $0x4] sm:$0xf]
          %v404 = vld [vmem:[%s401 + $0x8] sm:$0xf]
          %v405 = vld [vmem:[%s401 + $0xc] sm:$0xf]
          %v408 = vunpack.c.l.b16 %v399
          %v409 = vunpack.c.l.b16 %v400
          %v410 = vrot.slane %v409, 7
          %v411 = vsel %vm277, %v410, %v408
          %v412 = vpack.c.b16 %v411, %v411
          %v417 = vunpack.c.l.b16 %v402
          %v418 = vunpack.c.l.b16 %v403
          %v419 = vunpack.c.l.b16 %v404
          %v420 = vunpack.c.l.b16 %v405
          %v421 = vpack.c.b16 %v418, %v417
          %v422 = vpack.c.b16 %v420, %v419
          %v426 = vsel %vm244, %v412, 0
          %428 = vmatprep.subr.bf16.mxu0 0
          %429 = vmatpush1.bf16.msra.mxu0 %v421
          %430 = vmatprep.subr.bf16.mxu0 0
          %431 = vmatpush1.bf16.msra.mxu0 %v422
          %432 = vmatprep.subr.bf16.mxu0 0
          %433 = vmatpush1.bf16.msra.mxu0 0
          %434 = vmatprep.subr.bf16.mxu0 0
          %435 = vmatpush1.bf16.msra.mxu0 0
          %436 = vmatprep.subr.bf16.mxu0 0
          %437 = vmatpush1.bf16.msra.mxu0 0
          %438 = vmatprep.subr.bf16.mxu0 0
          %439 = vmatpush1.bf16.msra.mxu0 0
          %440 = vmatprep.subr.bf16.mxu0 0
          %441 = vmatpush1.bf16.msra.mxu0 0
          %442 = vmatprep.subr.bf16.mxu0 0
          %443 = vmatpush1.bf16.msra.mxu0 0
          %444 = vmatprep.subr.bf16.mxu0 0
          %445 = vmatpush1.bf16.msra.mxu0 0
          %446 = vmatprep.subr.bf16.mxu0 0
          %447 = vmatpush1.bf16.msra.mxu0 0
          %448 = vmatprep.subr.bf16.mxu0 0
          %449 = vmatpush1.bf16.msra.mxu0 0
          %450 = vmatprep.subr.bf16.mxu0 0
          %451 = vmatpush1.bf16.msra.mxu0 0
          %452 = vmatprep.subr.bf16.mxu0 0
          %453 = vmatpush1.bf16.msra.mxu0 0
          %454 = vmatprep.subr.bf16.mxu0 0
          %455 = vmatpush1.bf16.msra.mxu0 0
          %456 = vmatprep.subr.bf16.mxu0 0
          %457 = vmatpush1.bf16.msra.mxu0 0
          %458 = vmatprep.subr.bf16.mxu0 0
          %459 = vmatpush1.bf16.msra.mxu0 0
          %460 = vmatprep.mubr.bf16.mxu0 0
          %461 = vmatmul.mubr.bf16.gmra.mrb[0].mxu0 %v426
          %v462 = vpop.f32.mrb[0].mxu0
          %v463 = vadd.f32 0.0, %v462
          %v464 = vpop.f32.mrb[0].mxu0
          %v465 = vpop.f32.mrb[0].mxu0
          %v466 = vpop.f32.mrb[0].mxu0
          %467 = vdwg.mxu0
          %v468 = vadd.f32 %v392, %v463
          %v469 = vld [vmem:[#allocation2 + $0x3] sm:$0x1]
          %v470 = vld [vmem:[#allocation2 + $0x1b] sm:$0x1]
          %v471 = vpack.c.bf16 %v469, %v469
          %v472 = vpack.c.bf16 %v470, %v470
          %s473 = scalar_lea.vmem [#allocation6], 48
          %v474 = vld [vmem:[%s473] sm:$0xf]
          %v475 = vld [vmem:[%s473 + $0x4] sm:$0xf]
          %v476 = vld [vmem:[%s473 + $0x8] sm:$0xf]
          %v477 = vld [vmem:[%s473 + $0xc] sm:$0xf]
          %v480 = vunpack.c.l.b16 %v471
          %v481 = vunpack.c.l.b16 %v472
          %v482 = vrot.slane %v481, 7
          %v483 = vsel %vm277, %v482, %v480
          %v484 = vpack.c.b16 %v483, %v483
          %v489 = vunpack.c.l.b16 %v474
          %v490 = vunpack.c.l.b16 %v475
          %v491 = vunpack.c.l.b16 %v476
          %v492 = vunpack.c.l.b16 %v477
          %v493 = vpack.c.b16 %v490, %v489
          %v494 = vpack.c.b16 %v492, %v491
          %v498 = vsel %vm244, %v484, 0
          %500 = vmatprep.subr.bf16.mxu0 0
          %501 = vmatpush1.bf16.msra.mxu0 %v493
          %502 = vmatprep.subr.bf16.mxu0 0
          %503 = vmatpush1.bf16.msra.mxu0 %v494
          %504 = vmatprep.subr.bf16.mxu0 0
          %505 = vmatpush1.bf16.msra.mxu0 0
          %506 = vmatprep.subr.bf16.mxu0 0
          %507 = vmatpush1.bf16.msra.mxu0 0
          %508 = vmatprep.subr.bf16.mxu0 0
          %509 = vmatpush1.bf16.msra.mxu0 0
          %510 = vmatprep.subr.bf16.mxu0 0
          %511 = vmatpush1.bf16.msra.mxu0 0
          %512 = vmatprep.subr.bf16.mxu0 0
          %513 = vmatpush1.bf16.msra.mxu0 0
          %514 = vmatprep.subr.bf16.mxu0 0
          %515 = vmatpush1.bf16.msra.mxu0 0
          %516 = vmatprep.subr.bf16.mxu0 0
          %517 = vmatpush1.bf16.msra.mxu0 0
          %518 = vmatprep.subr.bf16.mxu0 0
          %519 = vmatpush1.bf16.msra.mxu0 0
          %520 = vmatprep.subr.bf16.mxu0 0
          %521 = vmatpush1.bf16.msra.mxu0 0
          %522 = vmatprep.subr.bf16.mxu0 0
          %523 = vmatpush1.bf16.msra.mxu0 0
          %524 = vmatprep.subr.bf16.mxu0 0
          %525 = vmatpush1.bf16.msra.mxu0 0
          %526 = vmatprep.subr.bf16.mxu0 0
          %527 = vmatpush1.bf16.msra.mxu0 0
          %528 = vmatprep.subr.bf16.mxu0 0
          %529 = vmatpush1.bf16.msra.mxu0 0
          %530 = vmatprep.subr.bf16.mxu0 0
          %531 = vmatpush1.bf16.msra.mxu0 0
          %532 = vmatprep.mubr.bf16.mxu0 0
          %533 = vmatmul.mubr.bf16.gmra.mrb[0].mxu0 %v498
          %v534 = vpop.f32.mrb[0].mxu0
          %v535 = vadd.f32 0.0, %v534
          %v536 = vpop.f32.mrb[0].mxu0
          %v537 = vpop.f32.mrb[0].mxu0
          %v538 = vpop.f32.mrb[0].mxu0
          %539 = vdwg.mxu0
          %v540 = vadd.f32 %v468, %v535
          %v541 = vld [vmem:[#allocation2 + $0x4] sm:$0x1]
          %v542 = vld [vmem:[#allocation2 + $0x1c] sm:$0x1]
          %v543 = vpack.c.bf16 %v541, %v541
          %v544 = vpack.c.bf16 %v542, %v542
          %s545 = scalar_lea.vmem [#allocation6], 64
          %v546 = vld [vmem:[%s545] sm:$0xf]
          %v547 = vld [vmem:[%s545 + $0x4] sm:$0xf]
          %v548 = vld [vmem:[%s545 + $0x8] sm:$0xf]
          %v549 = vld [vmem:[%s545 + $0xc] sm:$0xf]
          %v552 = vunpack.c.l.b16 %v543
          %v553 = vunpack.c.l.b16 %v544
          %v554 = vrot.slane %v553, 7
          %v555 = vsel %vm277, %v554, %v552
          %v556 = vpack.c.b16 %v555, %v555
          %v561 = vunpack.c.l.b16 %v546
          %v562 = vunpack.c.l.b16 %v547
          %v563 = vunpack.c.l.b16 %v548
          %v564 = vunpack.c.l.b16 %v549
          %v565 = vpack.c.b16 %v562, %v561
          %v566 = vpack.c.b16 %v564, %v563
          %v570 = vsel %vm244, %v556, 0
          %572 = vmatprep.subr.bf16.mxu0 0
          %573 = vmatpush1.bf16.msra.mxu0 %v565
          %574 = vmatprep.subr.bf16.mxu0 0
          %575 = vmatpush1.bf16.msra.mxu0 %v566
          %576 = vmatprep.subr.bf16.mxu0 0
          %577 = vmatpush1.bf16.msra.mxu0 0
          %578 = vmatprep.subr.bf16.mxu0 0
          %579 = vmatpush1.bf16.msra.mxu0 0
          %580 = vmatprep.subr.bf16.mxu0 0
          %581 = vmatpush1.bf16.msra.mxu0 0
          %582 = vmatprep.subr.bf16.mxu0 0
          %583 = vmatpush1.bf16.msra.mxu0 0
          %584 = vmatprep.subr.bf16.mxu0 0
          %585 = vmatpush1.bf16.msra.mxu0 0
          %586 = vmatprep.subr.bf16.mxu0 0
          %587 = vmatpush1.bf16.msra.mxu0 0
          %588 = vmatprep.subr.bf16.mxu0 0
          %589 = vmatpush1.bf16.msra.mxu0 0
          %590 = vmatprep.subr.bf16.mxu0 0
          %591 = vmatpush1.bf16.msra.mxu0 0
          %592 = vmatprep.subr.bf16.mxu0 0
          %593 = vmatpush1.bf16.msra.mxu0 0
          %594 = vmatprep.subr.bf16.mxu0 0
          %595 = vmatpush1.bf16.msra.mxu0 0
          %596 = vmatprep.subr.bf16.mxu0 0
          %597 = vmatpush1.bf16.msra.mxu0 0
          %598 = vmatprep.subr.bf16.mxu0 0
          %599 = vmatpush1.bf16.msra.mxu0 0
          %600 = vmatprep.subr.bf16.mxu0 0
          %601 = vmatpush1.bf16.msra.mxu0 0
          %602 = vmatprep.subr.bf16.mxu0 0
          %603 = vmatpush1.bf16.msra.mxu0 0
          %604 = vmatprep.mubr.bf16.mxu0 0
          %605 = vmatmul.mubr.bf16.gmra.mrb[0].mxu0 %v570
          %v606 = vpop.f32.mrb[0].mxu0
          %v607 = vadd.f32 0.0, %v606
          %v608 = vpop.f32.mrb[0].mxu0
          %v609 = vpop.f32.mrb[0].mxu0
          %v610 = vpop.f32.mrb[0].mxu0
          %611 = vdwg.mxu0
          %v612 = vadd.f32 %v540, %v607
          %v613 = vld [vmem:[#allocation2 + $0x5] sm:$0x1]
          %v614 = vld [vmem:[#allocation2 + $0x1d] sm:$0x1]
          %v615 = vpack.c.bf16 %v613, %v613
          %v616 = vpack.c.bf16 %v614, %v614
          %s617 = scalar_lea.vmem [#allocation6], 80
          %v618 = vld [vmem:[%s617] sm:$0xf]
          %v619 = vld [vmem:[%s617 + $0x4] sm:$0xf]
          %v620 = vld [vmem:[%s617 + $0x8] sm:$0xf]
          %v621 = vld [vmem:[%s617 + $0xc] sm:$0xf]
          %v624 = vunpack.c.l.b16 %v615
          %v625 = vunpack.c.l.b16 %v616
          %v626 = vrot.slane %v625, 7
          %v627 = vsel %vm277, %v626, %v624
          %v628 = vpack.c.b16 %v627, %v627
          %v633 = vunpack.c.l.b16 %v618
          %v634 = vunpack.c.l.b16 %v619
          %v635 = vunpack.c.l.b16 %v620
          %v636 = vunpack.c.l.b16 %v621
          %v637 = vpack.c.b16 %v634, %v633
          %v638 = vpack.c.b16 %v636, %v635
          %v642 = vsel %vm244, %v628, 0
          %644 = vmatprep.subr.bf16.mxu0 0
          %645 = vmatpush1.bf16.msra.mxu0 %v637
          %646 = vmatprep.subr.bf16.mxu0 0
          %647 = vmatpush1.bf16.msra.mxu0 %v638
          %648 = vmatprep.subr.bf16.mxu0 0
          %649 = vmatpush1.bf16.msra.mxu0 0
          %650 = vmatprep.subr.bf16.mxu0 0
          %651 = vmatpush1.bf16.msra.mxu0 0
          %652 = vmatprep.subr.bf16.mxu0 0
          %653 = vmatpush1.bf16.msra.mxu0 0
          %654 = vmatprep.subr.bf16.mxu0 0
          %655 = vmatpush1.bf16.msra.mxu0 0
          %656 = vmatprep.subr.bf16.mxu0 0
          %657 = vmatpush1.bf16.msra.mxu0 0
          %658 = vmatprep.subr.bf16.mxu0 0
          %659 = vmatpush1.bf16.msra.mxu0 0
          %660 = vmatprep.subr.bf16.mxu0 0
          %661 = vmatpush1.bf16.msra.mxu0 0
          %662 = vmatprep.subr.bf16.mxu0 0
          %663 = vmatpush1.bf16.msra.mxu0 0
          %664 = vmatprep.subr.bf16.mxu0 0
          %665 = vmatpush1.bf16.msra.mxu0 0
          %666 = vmatprep.subr.bf16.mxu0 0
          %667 = vmatpush1.bf16.msra.mxu0 0
          %668 = vmatprep.subr.bf16.mxu0 0
          %669 = vmatpush1.bf16.msra.mxu0 0
          %670 = vmatprep.subr.bf16.mxu0 0
          %671 = vmatpush1.bf16.msra.mxu0 0
          %672 = vmatprep.subr.bf16.mxu0 0
          %673 = vmatpush1.bf16.msra.mxu0 0
          %674 = vmatprep.subr.bf16.mxu0 0
          %675 = vmatpush1.bf16.msra.mxu0 0
          %676 = vmatprep.mubr.bf16.mxu0 0
          %677 = vmatmul.mubr.bf16.gmra.mrb[0].mxu0 %v642
          %v678 = vpop.f32.mrb[0].mxu0
          %v679 = vadd.f32 0.0, %v678
          %v680 = vpop.f32.mrb[0].mxu0
          %v681 = vpop.f32.mrb[0].mxu0
          %v682 = vpop.f32.mrb[0].mxu0
          %683 = vdwg.mxu0
          %v684 = vadd.f32 %v612, %v679
          %v685 = vld [vmem:[#allocation2 + $0x6] sm:$0x1]
          %v686 = vld [vmem:[#allocation2 + $0x1e] sm:$0x1]
          %v687 = vpack.c.bf16 %v685, %v685
          %v688 = vpack.c.bf16 %v686, %v686
          %s689 = scalar_lea.vmem [#allocation6], 96
          %v690 = vld [vmem:[%s689] sm:$0xf]
          %v691 = vld [vmem:[%s689 + $0x4] sm:$0xf]
          %v692 = vld [vmem:[%s689 + $0x8] sm:$0xf]
          %v693 = vld [vmem:[%s689 + $0xc] sm:$0xf]
          %v696 = vunpack.c.l.b16 %v687
          %v697 = vunpack.c.l.b16 %v688
          %v698 = vrot.slane %v697, 7
          %v699 = vsel %vm277, %v698, %v696
          %v700 = vpack.c.b16 %v699, %v699
          %v705 = vunpack.c.l.b16 %v690
          %v706 = vunpack.c.l.b16 %v691
          %v707 = vunpack.c.l.b16 %v692
          %v708 = vunpack.c.l.b16 %v693
          %v709 = vpack.c.b16 %v706, %v705
          %v710 = vpack.c.b16 %v708, %v707
          %v714 = vsel %vm244, %v700, 0
          %716 = vmatprep.subr.bf16.mxu0 0
          %717 = vmatpush1.bf16.msra.mxu0 %v709
          %718 = vmatprep.subr.bf16.mxu0 0
          %719 = vmatpush1.bf16.msra.mxu0 %v710
          %720 = vmatprep.subr.bf16.mxu0 0
          %721 = vmatpush1.bf16.msra.mxu0 0
          %722 = vmatprep.subr.bf16.mxu0 0
          %723 = vmatpush1.bf16.msra.mxu0 0
          %724 = vmatprep.subr.bf16.mxu0 0
          %725 = vmatpush1.bf16.msra.mxu0 0
          %726 = vmatprep.subr.bf16.mxu0 0
          %727 = vmatpush1.bf16.msra.mxu0 0
          %728 = vmatprep.subr.bf16.mxu0 0
          %729 = vmatpush1.bf16.msra.mxu0 0
          %730 = vmatprep.subr.bf16.mxu0 0
          %731 = vmatpush1.bf16.msra.mxu0 0
          %732 = vmatprep.subr.bf16.mxu0 0
          %733 = vmatpush1.bf16.msra.mxu0 0
          %734 = vmatprep.subr.bf16.mxu0 0
          %735 = vmatpush1.bf16.msra.mxu0 0
          %736 = vmatprep.subr.bf16.mxu0 0
          %737 = vmatpush1.bf16.msra.mxu0 0
          %738 = vmatprep.subr.bf16.mxu0 0
          %739 = vmatpush1.bf16.msra.mxu0 0
          %740 = vmatprep.subr.bf16.mxu0 0
          %741 = vmatpush1.bf16.msra.mxu0 0
          %742 = vmatprep.subr.bf16.mxu0 0
          %743 = vmatpush1.bf16.msra.mxu0 0
          %744 = vmatprep.subr.bf16.mxu0 0
          %745 = vmatpush1.bf16.msra.mxu0 0
          %746 = vmatprep.subr.bf16.mxu0 0
          %747 = vmatpush1.bf16.msra.mxu0 0
          %748 = vmatprep.mubr.bf16.mxu0 0
          %749 = vmatmul.mubr.bf16.gmra.mrb[0].mxu0 %v714
          %v750 = vpop.f32.mrb[0].mxu0
          %v751 = vadd.f32 0.0, %v750
          %v752 = vpop.f32.mrb[0].mxu0
          %v753 = vpop.f32.mrb[0].mxu0
          %v754 = vpop.f32.mrb[0].mxu0
          %755 = vdwg.mxu0
          %v756 = vadd.f32 %v684, %v751
          %v757 = vld [vmem:[#allocation2 + $0x7] sm:$0x1]
          %v758 = vld [vmem:[#allocation2 + $0x1f] sm:$0x1]
          %v759 = vpack.c.bf16 %v757, %v757
          %v760 = vpack.c.bf16 %v758, %v758
          %s761 = scalar_lea.vmem [#allocation6], 112
          %v762 = vld [vmem:[%s761] sm:$0xf]
          %v763 = vld [vmem:[%s761 + $0x4] sm:$0xf]
          %v764 = vld [vmem:[%s761 + $0x8] sm:$0xf]
          %v765 = vld [vmem:[%s761 + $0xc] sm:$0xf]
          %v768 = vunpack.c.l.b16 %v759
          %v769 = vunpack.c.l.b16 %v760
          %v770 = vrot.slane %v769, 7
          %v771 = vsel %vm277, %v770, %v768
          %v772 = vpack.c.b16 %v771, %v771
          %v777 = vunpack.c.l.b16 %v762
          %v778 = vunpack.c.l.b16 %v763
          %v779 = vunpack.c.l.b16 %v764
          %v780 = vunpack.c.l.b16 %v765
          %v781 = vpack.c.b16 %v778, %v777
          %v782 = vpack.c.b16 %v780, %v779
          %v786 = vsel %vm244, %v772, 0
          %788 = vmatprep.subr.bf16.mxu0 0
          %789 = vmatpush1.bf16.msra.mxu0 %v781
          %790 = vmatprep.subr.bf16.mxu0 0
          %791 = vmatpush1.bf16.msra.mxu0 %v782
          %792 = vmatprep.subr.bf16.mxu0 0
          %793 = vmatpush1.bf16.msra.mxu0 0
          %794 = vmatprep.subr.bf16.mxu0 0
          %795 = vmatpush1.bf16.msra.mxu0 0
          %796 = vmatprep.subr.bf16.mxu0 0
          %797 = vmatpush1.bf16.msra.mxu0 0
          %798 = vmatprep.subr.bf16.mxu0 0
          %799 = vmatpush1.bf16.msra.mxu0 0
          %800 = vmatprep.subr.bf16.mxu0 0
          %801 = vmatpush1.bf16.msra.mxu0 0
          %802 = vmatprep.subr.bf16.mxu0 0
          %803 = vmatpush1.bf16.msra.mxu0 0
          %804 = vmatprep.subr.bf16.mxu0 0
          %805 = vmatpush1.bf16.msra.mxu0 0
          %806 = vmatprep.subr.bf16.mxu0 0
          %807 = vmatpush1.bf16.msra.mxu0 0
          %808 = vmatprep.subr.bf16.mxu0 0
          %809 = vmatpush1.bf16.msra.mxu0 0
          %810 = vmatprep.subr.bf16.mxu0 0
          %811 = vmatpush1.bf16.msra.mxu0 0
          %812 = vmatprep.subr.bf16.mxu0 0
          %813 = vmatpush1.bf16.msra.mxu0 0
          %814 = vmatprep.subr.bf16.mxu0 0
          %815 = vmatpush1.bf16.msra.mxu0 0
          %816 = vmatprep.subr.bf16.mxu0 0
          %817 = vmatpush1.bf16.msra.mxu0 0
          %818 = vmatprep.subr.bf16.mxu0 0
          %819 = vmatpush1.bf16.msra.mxu0 0
          %820 = vmatprep.mubr.bf16.mxu0 0
          %821 = vmatmul.mubr.bf16.gmra.mrb[0].mxu0 %v786
          %v822 = vpop.f32.mrb[0].mxu0
          %v823 = vadd.f32 0.0, %v822
          %v824 = vpop.f32.mrb[0].mxu0
          %v825 = vpop.f32.mrb[0].mxu0
          %v826 = vpop.f32.mrb[0].mxu0
          %827 = vdwg.mxu0
          %v828 = vadd.f32 %v756, %v823
          %s829 = scalar_lea.vmem [#allocation2], 8
          %v830 = vld [vmem:[%s829] sm:$0x1]
          %v831 = vld [vmem:[%s829 + $0x18] sm:$0x1]
          %v832 = vpack.c.bf16 %v830, %v830
          %v833 = vpack.c.bf16 %v831, %v831
          %s834 = scalar_lea.vmem [#allocation6], 128
          %v835 = vld [vmem:[%s834] sm:$0xf]
          %v836 = vld [vmem:[%s834 + $0x4] sm:$0xf]
          %v837 = vld [vmem:[%s834 + $0x8] sm:$0xf]
          %v838 = vld [vmem:[%s834 + $0xc] sm:$0xf]
          %v841 = vunpack.c.l.b16 %v832
          %v842 = vunpack.c.l.b16 %v833
          %v843 = vrot.slane %v842, 7
          %v844 = vsel %vm277, %v843, %v841
          %v845 = vpack.c.b16 %v844, %v844
          %v850 = vunpack.c.l.b16 %v835
          %v851 = vunpack.c.l.b16 %v836
          %v852 = vunpack.c.l.b16 %v837
          %v853 = vunpack.c.l.b16 %v838
          %v854 = vpack.c.b16 %v851, %v850
          %v855 = vpack.c.b16 %v853, %v852
          %v859 = vsel %vm244, %v845, 0
          %861 = vmatprep.subr.bf16.mxu0 0
          %862 = vmatpush1.bf16.msra.mxu0 %v854
          %863 = vmatprep.subr.bf16.mxu0 0
          %864 = vmatpush1.bf16.msra.mxu0 %v855
          %865 = vmatprep.subr.bf16.mxu0 0
          %866 = vmatpush1.bf16.msra.mxu0 0
          %867 = vmatprep.subr.bf16.mxu0 0
          %868 = vmatpush1.bf16.msra.mxu0 0
          %869 = vmatprep.subr.bf16.mxu0 0
          %870 = vmatpush1.bf16.msra.mxu0 0
          %871 = vmatprep.subr.bf16.mxu0 0
          %872 = vmatpush1.bf16.msra.mxu0 0
          %873 = vmatprep.subr.bf16.mxu0 0
          %874 = vmatpush1.bf16.msra.mxu0 0
          %875 = vmatprep.subr.bf16.mxu0 0
          %876 = vmatpush1.bf16.msra.mxu0 0
          %877 = vmatprep.subr.bf16.mxu0 0
          %878 = vmatpush1.bf16.msra.mxu0 0
          %879 = vmatprep.subr.bf16.mxu0 0
          %880 = vmatpush1.bf16.msra.mxu0 0
          %881 = vmatprep.subr.bf16.mxu0 0
          %882 = vmatpush1.bf16.msra.mxu0 0
          %883 = vmatprep.subr.bf16.mxu0 0
          %884 = vmatpush1.bf16.msra.mxu0 0
          %885 = vmatprep.subr.bf16.mxu0 0
          %886 = vmatpush1.bf16.msra.mxu0 0
          %887 = vmatprep.subr.bf16.mxu0 0
          %888 = vmatpush1.bf16.msra.mxu0 0
          %889 = vmatprep.subr.bf16.mxu0 0
          %890 = vmatpush1.bf16.msra.mxu0 0
          %891 = vmatprep.subr.bf16.mxu0 0
          %892 = vmatpush1.bf16.msra.mxu0 0
          %893 = vmatprep.mubr.bf16.mxu0 0
          %894 = vmatmul.mubr.bf16.gmra.mrb[0].mxu0 %v859
          %v895 = vpop.f32.mrb[0].mxu0
          %v896 = vadd.f32 0.0, %v895
          %v897 = vpop.f32.mrb[0].mxu0
          %v898 = vpop.f32.mrb[0].mxu0
          %v899 = vpop.f32.mrb[0].mxu0
          %900 = vdwg.mxu0
          %v901 = vadd.f32 %v828, %v896
          %v902 = vld [vmem:[%s829 + $0x1] sm:$0x1]
          %v903 = vld [vmem:[%s829 + $0x19] sm:$0x1]
          %v904 = vpack.c.bf16 %v902, %v902
          %v905 = vpack.c.bf16 %v903, %v903
          %s906 = scalar_lea.vmem [#allocation6], 144
          %v907 = vld [vmem:[%s906] sm:$0xf]
          %v908 = vld [vmem:[%s906 + $0x4] sm:$0xf]
          %v909 = vld [vmem:[%s906 + $0x8] sm:$0xf]
          %v910 = vld [vmem:[%s906 + $0xc] sm:$0xf]
          %v913 = vunpack.c.l.b16 %v904
          %v914 = vunpack.c.l.b16 %v905
          %v915 = vrot.slane %v914, 7
          %v916 = vsel %vm277, %v915, %v913
          %v917 = vpack.c.b16 %v916, %v916
          %v922 = vunpack.c.l.b16 %v907
          %v923 = vunpack.c.l.b16 %v908
          %v924 = vunpack.c.l.b16 %v909
          %v925 = vunpack.c.l.b16 %v910
          %v926 = vpack.c.b16 %v923, %v922
          %v927 = vpack.c.b16 %v925, %v924
          %v931 = vsel %vm244, %v917, 0
          %933 = vmatprep.subr.bf16.mxu0 0
          %934 = vmatpush1.bf16.msra.mxu0 %v926
          %935 = vmatprep.subr.bf16.mxu0 0
          %936 = vmatpush1.bf16.msra.mxu0 %v927
          %937 = vmatprep.subr.bf16.mxu0 0
          %938 = vmatpush1.bf16.msra.mxu0 0
          %939 = vmatprep.subr.bf16.mxu0 0
          %940 = vmatpush1.bf16.msra.mxu0 0
          %941 = vmatprep.subr.bf16.mxu0 0
          %942 = vmatpush1.bf16.msra.mxu0 0
          %943 = vmatprep.subr.bf16.mxu0 0
          %944 = vmatpush1.bf16.msra.mxu0 0
          %945 = vmatprep.subr.bf16.mxu0 0
          %946 = vmatpush1.bf16.msra.mxu0 0
          %947 = vmatprep.subr.bf16.mxu0 0
          %948 = vmatpush1.bf16.msra.mxu0 0
          %949 = vmatprep.subr.bf16.mxu0 0
          %950 = vmatpush1.bf16.msra.mxu0 0
          %951 = vmatprep.subr.bf16.mxu0 0
          %952 = vmatpush1.bf16.msra.mxu0 0
          %953 = vmatprep.subr.bf16.mxu0 0
          %954 = vmatpush1.bf16.msra.mxu0 0
          %955 = vmatprep.subr.bf16.mxu0 0
          %956 = vmatpush1.bf16.msra.mxu0 0
          %957 = vmatprep.subr.bf16.mxu0 0
          %958 = vmatpush1.bf16.msra.mxu0 0
          %959 = vmatprep.subr.bf16.mxu0 0
          %960 = vmatpush1.bf16.msra.mxu0 0
          %961 = vmatprep.subr.bf16.mxu0 0
          %962 = vmatpush1.bf16.msra.mxu0 0
          %963 = vmatprep.subr.bf16.mxu0 0
          %964 = vmatpush1.bf16.msra.mxu0 0
          %965 = vmatprep.mubr.bf16.mxu0 0
          %966 = vmatmul.mubr.bf16.gmra.mrb[0].mxu0 %v931
          %v967 = vpop.f32.mrb[0].mxu0
          %v968 = vadd.f32 0.0, %v967
          %v969 = vpop.f32.mrb[0].mxu0
          %v970 = vpop.f32.mrb[0].mxu0
          %v971 = vpop.f32.mrb[0].mxu0
          %972 = vdwg.mxu0
          %v973 = vadd.f32 %v901, %v968
          %v974 = vld [vmem:[%s829 + $0x2] sm:$0x1]
          %v975 = vld [vmem:[%s829 + $0x1a] sm:$0x1]
          %v976 = vpack.c.bf16 %v974, %v974
          %v977 = vpack.c.bf16 %v975, %v975
          %s978 = scalar_lea.vmem [#allocation6], 160
          %v979 = vld [vmem:[%s978] sm:$0xf]
          %v980 = vld [vmem:[%s978 + $0x4] sm:$0xf]
          %v981 = vld [vmem:[%s978 + $0x8] sm:$0xf]
          %v982 = vld [vmem:[%s978 + $0xc] sm:$0xf]
          %v985 = vunpack.c.l.b16 %v976
          %v986 = vunpack.c.l.b16 %v977
          %v987 = vrot.slane %v986, 7
          %v988 = vsel %vm277, %v987, %v985
          %v989 = vpack.c.b16 %v988, %v988
          %v994 = vunpack.c.l.b16 %v979
          %v995 = vunpack.c.l.b16 %v980
          %v996 = vunpack.c.l.b16 %v981
          %v997 = vunpack.c.l.b16 %v982
          %v998 = vpack.c.b16 %v995, %v994
          %v999 = vpack.c.b16 %v997, %v996
          %v1003 = vsel %vm244, %v989, 0
          %1005 = vmatprep.subr.bf16.mxu0 0
          %1006 = vmatpush1.bf16.msra.mxu0 %v998
          %1007 = vmatprep.subr.bf16.mxu0 0
          %1008 = vmatpush1.bf16.msra.mxu0 %v999
          %1009 = vmatprep.subr.bf16.mxu0 0
          %1010 = vmatpush1.bf16.msra.mxu0 0
          %1011 = vmatprep.subr.bf16.mxu0 0
          %1012 = vmatpush1.bf16.msra.mxu0 0
          %1013 = vmatprep.subr.bf16.mxu0 0
          %1014 = vmatpush1.bf16.msra.mxu0 0
          %1015 = vmatprep.subr.bf16.mxu0 0
          %1016 = vmatpush1.bf16.msra.mxu0 0
          %1017 = vmatprep.subr.bf16.mxu0 0
          %1018 = vmatpush1.bf16.msra.mxu0 0
          %1019 = vmatprep.subr.bf16.mxu0 0
          %1020 = vmatpush1.bf16.msra.mxu0 0
          %1021 = vmatprep.subr.bf16.mxu0 0
          %1022 = vmatpush1.bf16.msra.mxu0 0
          %1023 = vmatprep.subr.bf16.mxu0 0
          %1024 = vmatpush1.bf16.msra.mxu0 0
          %1025 = vmatprep.subr.bf16.mxu0 0
          %1026 = vmatpush1.bf16.msra.mxu0 0
          %1027 = vmatprep.subr.bf16.mxu0 0
          %1028 = vmatpush1.bf16.msra.mxu0 0
          %1029 = vmatprep.subr.bf16.mxu0 0
          %1030 = vmatpush1.bf16.msra.mxu0 0
          %1031 = vmatprep.subr.bf16.mxu0 0
          %1032 = vmatpush1.bf16.msra.mxu0 0
          %1033 = vmatprep.subr.bf16.mxu0 0
          %1034 = vmatpush1.bf16.msra.mxu0 0
          %1035 = vmatprep.subr.bf16.mxu0 0
          %1036 = vmatpush1.bf16.msra.mxu0 0
          %1037 = vmatprep.mubr.bf16.mxu0 0
          %1038 = vmatmul.mubr.bf16.gmra.mrb[0].mxu0 %v1003
          %v1039 = vpop.f32.mrb[0].mxu0
          %v1040 = vadd.f32 0.0, %v1039
          %v1041 = vpop.f32.mrb[0].mxu0
          %v1042 = vpop.f32.mrb[0].mxu0
          %v1043 = vpop.f32.mrb[0].mxu0
          %1044 = vdwg.mxu0
          %v1045 = vadd.f32 %v973, %v1040
          %v1046 = vld [vmem:[%s829 + $0x3] sm:$0x1]
          %v1047 = vld [vmem:[%s829 + $0x1b] sm:$0x1]
          %v1048 = vpack.c.bf16 %v1046, %v1046
          %v1049 = vpack.c.bf16 %v1047, %v1047
          %s1050 = scalar_lea.vmem [#allocation6], 176
          %v1051 = vld [vmem:[%s1050] sm:$0xf]
          %v1052 = vld [vmem:[%s1050 + $0x4] sm:$0xf]
          %v1053 = vld [vmem:[%s1050 + $0x8] sm:$0xf]
          %v1054 = vld [vmem:[%s1050 + $0xc] sm:$0xf]
          %v1057 = vunpack.c.l.b16 %v1048
          %v1058 = vunpack.c.l.b16 %v1049
          %v1059 = vrot.slane %v1058, 7
          %v1060 = vsel %vm277, %v1059, %v1057
          %v1061 = vpack.c.b16 %v1060, %v1060
          %v1066 = vunpack.c.l.b16 %v1051
          %v1067 = vunpack.c.l.b16 %v1052
          %v1068 = vunpack.c.l.b16 %v1053
          %v1069 = vunpack.c.l.b16 %v1054
          %v1070 = vpack.c.b16 %v1067, %v1066
          %v1071 = vpack.c.b16 %v1069, %v1068
          %v1075 = vsel %vm244, %v1061, 0
          %1077 = vmatprep.subr.bf16.mxu0 0
          %1078 = vmatpush1.bf16.msra.mxu0 %v1070
          %1079 = vmatprep.subr.bf16.mxu0 0
          %1080 = vmatpush1.bf16.msra.mxu0 %v1071
          %1081 = vmatprep.subr.bf16.mxu0 0
          %1082 = vmatpush1.bf16.msra.mxu0 0
          %1083 = vmatprep.subr.bf16.mxu0 0
          %1084 = vmatpush1.bf16.msra.mxu0 0
          %1085 = vmatprep.subr.bf16.mxu0 0
          %1086 = vmatpush1.bf16.msra.mxu0 0
          %1087 = vmatprep.subr.bf16.mxu0 0
          %1088 = vmatpush1.bf16.msra.mxu0 0
          %1089 = vmatprep.subr.bf16.mxu0 0
          %1090 = vmatpush1.bf16.msra.mxu0 0
          %1091 = vmatprep.subr.bf16.mxu0 0
          %1092 = vmatpush1.bf16.msra.mxu0 0
          %1093 = vmatprep.subr.bf16.mxu0 0
          %1094 = vmatpush1.bf16.msra.mxu0 0
          %1095 = vmatprep.subr.bf16.mxu0 0
          %1096 = vmatpush1.bf16.msra.mxu0 0
          %1097 = vmatprep.subr.bf16.mxu0 0
          %1098 = vmatpush1.bf16.msra.mxu0 0
          %1099 = vmatprep.subr.bf16.mxu0 0
          %1100 = vmatpush1.bf16.msra.mxu0 0
          %1101 = vmatprep.subr.bf16.mxu0 0
          %1102 = vmatpush1.bf16.msra.mxu0 0
          %1103 = vmatprep.subr.bf16.mxu0 0
          %1104 = vmatpush1.bf16.msra.mxu0 0
          %1105 = vmatprep.subr.bf16.mxu0 0
          %1106 = vmatpush1.bf16.msra.mxu0 0
          %1107 = vmatprep.subr.bf16.mxu0 0
          %1108 = vmatpush1.bf16.msra.mxu0 0
          %1109 = vmatprep.mubr.bf16.mxu0 0
          %1110 = vmatmul.mubr.bf16.gmra.mrb[0].mxu0 %v1075
          %v1111 = vpop.f32.mrb[0].mxu0
          %v1112 = vadd.f32 0.0, %v1111
          %v1113 = vpop.f32.mrb[0].mxu0
          %v1114 = vpop.f32.mrb[0].mxu0
          %v1115 = vpop.f32.mrb[0].mxu0
          %1116 = vdwg.mxu0
          %v1117 = vadd.f32 %v1045, %v1112
          %v1118 = vld [vmem:[%s829 + $0x4] sm:$0x1]
          %v1119 = vld [vmem:[%s829 + $0x1c] sm:$0x1]
          %v1120 = vpack.c.bf16 %v1118, %v1118
          %v1121 = vpack.c.bf16 %v1119, %v1119
          %s1122 = scalar_lea.vmem [#allocation6], 192
          %v1123 = vld [vmem:[%s1122] sm:$0xf]
          %v1124 = vld [vmem:[%s1122 + $0x4] sm:$0xf]
          %v1125 = vld [vmem:[%s1122 + $0x8] sm:$0xf]
          %v1126 = vld [vmem:[%s1122 + $0xc] sm:$0xf]
          %v1129 = vunpack.c.l.b16 %v1120
          %v1130 = vunpack.c.l.b16 %v1121
          %v1131 = vrot.slane %v1130, 7
          %v1132 = vsel %vm277, %v1131, %v1129
          %v1133 = vpack.c.b16 %v1132, %v1132
          %v1138 = vunpack.c.l.b16 %v1123
          %v1139 = vunpack.c.l.b16 %v1124
          %v1140 = vunpack.c.l.b16 %v1125
          %v1141 = vunpack.c.l.b16 %v1126
          %v1142 = vpack.c.b16 %v1139, %v1138
          %v1143 = vpack.c.b16 %v1141, %v1140
          %v1147 = vsel %vm244, %v1133, 0
          %1149 = vmatprep.subr.bf16.mxu0 0
          %1150 = vmatpush1.bf16.msra.mxu0 %v1142
          %1151 = vmatprep.subr.bf16.mxu0 0
          %1152 = vmatpush1.bf16.msra.mxu0 %v1143
          %1153 = vmatprep.subr.bf16.mxu0 0
          %1154 = vmatpush1.bf16.msra.mxu0 0
          %1155 = vmatprep.subr.bf16.mxu0 0
          %1156 = vmatpush1.bf16.msra.mxu0 0
          %1157 = vmatprep.subr.bf16.mxu0 0
          %1158 = vmatpush1.bf16.msra.mxu0 0
          %1159 = vmatprep.subr.bf16.mxu0 0
          %1160 = vmatpush1.bf16.msra.mxu0 0
          %1161 = vmatprep.subr.bf16.mxu0 0
          %1162 = vmatpush1.bf16.msra.mxu0 0
          %1163 = vmatprep.subr.bf16.mxu0 0
          %1164 = vmatpush1.bf16.msra.mxu0 0
          %1165 = vmatprep.subr.bf16.mxu0 0
          %1166 = vmatpush1.bf16.msra.mxu0 0
          %1167 = vmatprep.subr.bf16.mxu0 0
          %1168 = vmatpush1.bf16.msra.mxu0 0
          %1169 = vmatprep.subr.bf16.mxu0 0
          %1170 = vmatpush1.bf16.msra.mxu0 0
          %1171 = vmatprep.subr.bf16.mxu0 0
          %1172 = vmatpush1.bf16.msra.mxu0 0
          %1173 = vmatprep.subr.bf16.mxu0 0
          %1174 = vmatpush1.bf16.msra.mxu0 0
          %1175 = vmatprep.subr.bf16.mxu0 0
          %1176 = vmatpush1.bf16.msra.mxu0 0
          %1177 = vmatprep.subr.bf16.mxu0 0
          %1178 = vmatpush1.bf16.msra.mxu0 0
          %1179 = vmatprep.subr.bf16.mxu0 0
          %1180 = vmatpush1.bf16.msra.mxu0 0
          %1181 = vmatprep.mubr.bf16.mxu0 0
          %1182 = vmatmul.mubr.bf16.gmra.mrb[0].mxu0 %v1147
          %v1183 = vpop.f32.mrb[0].mxu0
          %v1184 = vadd.f32 0.0, %v1183
          %v1185 = vpop.f32.mrb[0].mxu0
          %v1186 = vpop.f32.mrb[0].mxu0
          %v1187 = vpop.f32.mrb[0].mxu0
          %1188 = vdwg.mxu0
          %v1189 = vadd.f32 %v1117, %v1184
          %v1190 = vld [vmem:[%s829 + $0x5] sm:$0x1]
          %v1191 = vld [vmem:[%s829 + $0x1d] sm:$0x1]
          %v1192 = vpack.c.bf16 %v1190, %v1190
          %v1193 = vpack.c.bf16 %v1191, %v1191
          %s1194 = scalar_lea.vmem [#allocation6], 208
          %v1195 = vld [vmem:[%s1194] sm:$0xf]
          %v1196 = vld [vmem:[%s1194 + $0x4] sm:$0xf]
          %v1197 = vld [vmem:[%s1194 + $0x8] sm:$0xf]
          %v1198 = vld [vmem:[%s1194 + $0xc] sm:$0xf]
          %v1201 = vunpack.c.l.b16 %v1192
          %v1202 = vunpack.c.l.b16 %v1193
          %v1203 = vrot.slane %v1202, 7
          %v1204 = vsel %vm277, %v1203, %v1201
          %v1205 = vpack.c.b16 %v1204, %v1204
          %v1210 = vunpack.c.l.b16 %v1195
          %v1211 = vunpack.c.l.b16 %v1196
          %v1212 = vunpack.c.l.b16 %v1197
          %v1213 = vunpack.c.l.b16 %v1198
          %v1214 = vpack.c.b16 %v1211, %v1210
          %v1215 = vpack.c.b16 %v1213, %v1212
          %v1219 = vsel %vm244, %v1205, 0
          %1221 = vmatprep.subr.bf16.mxu0 0
          %1222 = vmatpush1.bf16.msra.mxu0 %v1214
          %1223 = vmatprep.subr.bf16.mxu0 0
          %1224 = vmatpush1.bf16.msra.mxu0 %v1215
          %1225 = vmatprep.subr.bf16.mxu0 0
          %1226 = vmatpush1.bf16.msra.mxu0 0
          %1227 = vmatprep.subr.bf16.mxu0 0
          %1228 = vmatpush1.bf16.msra.mxu0 0
          %1229 = vmatprep.subr.bf16.mxu0 0
          %1230 = vmatpush1.bf16.msra.mxu0 0
          %1231 = vmatprep.subr.bf16.mxu0 0
          %1232 = vmatpush1.bf16.msra.mxu0 0
          %1233 = vmatprep.subr.bf16.mxu0 0
          %1234 = vmatpush1.bf16.msra.mxu0 0
          %1235 = vmatprep.subr.bf16.mxu0 0
          %1236 = vmatpush1.bf16.msra.mxu0 0
          %1237 = vmatprep.subr.bf16.mxu0 0
          %1238 = vmatpush1.bf16.msra.mxu0 0
          %1239 = vmatprep.subr.bf16.mxu0 0
          %1240 = vmatpush1.bf16.msra.mxu0 0
          %1241 = vmatprep.subr.bf16.mxu0 0
          %1242 = vmatpush1.bf16.msra.mxu0 0
          %1243 = vmatprep.subr.bf16.mxu0 0
          %1244 = vmatpush1.bf16.msra.mxu0 0
          %1245 = vmatprep.subr.bf16.mxu0 0
          %1246 = vmatpush1.bf16.msra.mxu0 0
          %1247 = vmatprep.subr.bf16.mxu0 0
          %1248 = vmatpush1.bf16.msra.mxu0 0
          %1249 = vmatprep.subr.bf16.mxu0 0
          %1250 = vmatpush1.bf16.msra.mxu0 0
          %1251 = vmatprep.subr.bf16.mxu0 0
          %1252 = vmatpush1.bf16.msra.mxu0 0
          %1253 = vmatprep.mubr.bf16.mxu0 0
          %1254 = vmatmul.mubr.bf16.gmra.mrb[0].mxu0 %v1219
          %v1255 = vpop.f32.mrb[0].mxu0
          %v1256 = vadd.f32 0.0, %v1255
          %v1257 = vpop.f32.mrb[0].mxu0
          %v1258 = vpop.f32.mrb[0].mxu0
          %v1259 = vpop.f32.mrb[0].mxu0
          %1260 = vdwg.mxu0
          %v1261 = vadd.f32 %v1189, %v1256
          %v1262 = vld [vmem:[%s829 + $0x6] sm:$0x1]
          %v1263 = vld [vmem:[%s829 + $0x1e] sm:$0x1]
          %v1264 = vpack.c.bf16 %v1262, %v1262
          %v1265 = vpack.c.bf16 %v1263, %v1263
          %s1266 = scalar_lea.vmem [#allocation6], 224
          %v1267 = vld [vmem:[%s1266] sm:$0xf]
          %v1268 = vld [vmem:[%s1266 + $0x4] sm:$0xf]
          %v1269 = vld [vmem:[%s1266 + $0x8] sm:$0xf]
          %v1270 = vld [vmem:[%s1266 + $0xc] sm:$0xf]
          %v1273 = vunpack.c.l.b16 %v1264
          %v1274 = vunpack.c.l.b16 %v1265
          %v1275 = vrot.slane %v1274, 7
          %v1276 = vsel %vm277, %v1275, %v1273
          %v1277 = vpack.c.b16 %v1276, %v1276
          %v1282 = vunpack.c.l.b16 %v1267
          %v1283 = vunpack.c.l.b16 %v1268
          %v1284 = vunpack.c.l.b16 %v1269
          %v1285 = vunpack.c.l.b16 %v1270
          %v1286 = vpack.c.b16 %v1283, %v1282
          %v1287 = vpack.c.b16 %v1285, %v1284
          %v1291 = vsel %vm244, %v1277, 0
          %1293 = vmatprep.subr.bf16.mxu0 0
          %1294 = vmatpush1.bf16.msra.mxu0 %v1286
          %1295 = vmatprep.subr.bf16.mxu0 0
          %1296 = vmatpush1.bf16.msra.mxu0 %v1287
          %1297 = vmatprep.subr.bf16.mxu0 0
          %1298 = vmatpush1.bf16.msra.mxu0 0
          %1299 = vmatprep.subr.bf16.mxu0 0
          %1300 = vmatpush1.bf16.msra.mxu0 0
          %1301 = vmatprep.subr.bf16.mxu0 0
          %1302 = vmatpush1.bf16.msra.mxu0 0
          %1303 = vmatprep.subr.bf16.mxu0 0
          %1304 = vmatpush1.bf16.msra.mxu0 0
          %1305 = vmatprep.subr.bf16.mxu0 0
          %1306 = vmatpush1.bf16.msra.mxu0 0
          %1307 = vmatprep.subr.bf16.mxu0 0
          %1308 = vmatpush1.bf16.msra.mxu0 0
          %1309 = vmatprep.subr.bf16.mxu0 0
          %1310 = vmatpush1.bf16.msra.mxu0 0
          %1311 = vmatprep.subr.bf16.mxu0 0
          %1312 = vmatpush1.bf16.msra.mxu0 0
          %1313 = vmatprep.subr.bf16.mxu0 0
          %1314 = vmatpush1.bf16.msra.mxu0 0
          %1315 = vmatprep.subr.bf16.mxu0 0
          %1316 = vmatpush1.bf16.msra.mxu0 0
          %1317 = vmatprep.subr.bf16.mxu0 0
          %1318 = vmatpush1.bf16.msra.mxu0 0
          %1319 = vmatprep.subr.bf16.mxu0 0
          %1320 = vmatpush1.bf16.msra.mxu0 0
          %1321 = vmatprep.subr.bf16.mxu0 0
          %1322 = vmatpush1.bf16.msra.mxu0 0
          %1323 = vmatprep.subr.bf16.mxu0 0
          %1324 = vmatpush1.bf16.msra.mxu0 0
          %1325 = vmatprep.mubr.bf16.mxu0 0
          %1326 = vmatmul.mubr.bf16.gmra.mrb[0].mxu0 %v1291
          %v1327 = vpop.f32.mrb[0].mxu0
          %v1328 = vadd.f32 0.0, %v1327
          %v1329 = vpop.f32.mrb[0].mxu0
          %v1330 = vpop.f32.mrb[0].mxu0
          %v1331 = vpop.f32.mrb[0].mxu0
          %1332 = vdwg.mxu0
          %v1333 = vadd.f32 %v1261, %v1328
          %v1334 = vld [vmem:[%s829 + $0x7] sm:$0x1]
          %v1335 = vld [vmem:[%s829 + $0x1f] sm:$0x1]
          %v1336 = vpack.c.bf16 %v1334, %v1334
          %v1337 = vpack.c.bf16 %v1335, %v1335
          %s1338 = scalar_lea.vmem [#allocation6], 240
          %v1339 = vld [vmem:[%s1338] sm:$0xf]
          %v1340 = vld [vmem:[%s1338 + $0x4] sm:$0xf]
          %v1341 = vld [vmem:[%s1338 + $0x8] sm:$0xf]
          %v1342 = vld [vmem:[%s1338 + $0xc] sm:$0xf]
          %v1345 = vunpack.c.l.b16 %v1336
          %v1346 = vunpack.c.l.b16 %v1337
          %v1347 = vrot.slane %v1346, 7
          %v1348 = vsel %vm277, %v1347, %v1345
          %v1349 = vpack.c.b16 %v1348, %v1348
          %v1354 = vunpack.c.l.b16 %v1339
          %v1355 = vunpack.c.l.b16 %v1340
          %v1356 = vunpack.c.l.b16 %v1341
          %v1357 = vunpack.c.l.b16 %v1342
          %v1358 = vpack.c.b16 %v1355, %v1354
          %v1359 = vpack.c.b16 %v1357, %v1356
          %v1363 = vsel %vm244, %v1349, 0
          %1365 = vmatprep.subr.bf16.mxu0 0
          %1366 = vmatpush1.bf16.msra.mxu0 %v1358
          %1367 = vmatprep.subr.bf16.mxu0 0
          %1368 = vmatpush1.bf16.msra.mxu0 %v1359
          %1369 = vmatprep.subr.bf16.mxu0 0
          %1370 = vmatpush1.bf16.msra.mxu0 0
          %1371 = vmatprep.subr.bf16.mxu0 0
          %1372 = vmatpush1.bf16.msra.mxu0 0
          %1373 = vmatprep.subr.bf16.mxu0 0
          %1374 = vmatpush1.bf16.msra.mxu0 0
          %1375 = vmatprep.subr.bf16.mxu0 0
          %1376 = vmatpush1.bf16.msra.mxu0 0
          %1377 = vmatprep.subr.bf16.mxu0 0
          %1378 = vmatpush1.bf16.msra.mxu0 0
          %1379 = vmatprep.subr.bf16.mxu0 0
          %1380 = vmatpush1.bf16.msra.mxu0 0
          %1381 = vmatprep.subr.bf16.mxu0 0
          %1382 = vmatpush1.bf16.msra.mxu0 0
          %1383 = vmatprep.subr.bf16.mxu0 0
          %1384 = vmatpush1.bf16.msra.mxu0 0
          %1385 = vmatprep.subr.bf16.mxu0 0
          %1386 = vmatpush1.bf16.msra.mxu0 0
          %1387 = vmatprep.subr.bf16.mxu0 0
          %1388 = vmatpush1.bf16.msra.mxu0 0
          %1389 = vmatprep.subr.bf16.mxu0 0
          %1390 = vmatpush1.bf16.msra.mxu0 0
          %1391 = vmatprep.subr.bf16.mxu0 0
          %1392 = vmatpush1.bf16.msra.mxu0 0
          %1393 = vmatprep.subr.bf16.mxu0 0
          %1394 = vmatpush1.bf16.msra.mxu0 0
          %1395 = vmatprep.subr.bf16.mxu0 0
          %1396 = vmatpush1.bf16.msra.mxu0 0
          %1397 = vmatprep.mubr.bf16.mxu0 0
          %1398 = vmatmul.mubr.bf16.gmra.mrb[0].mxu0 %v1363
          %v1399 = vpop.f32.mrb[0].mxu0
          %v1400 = vadd.f32 0.0, %v1399
          %v1401 = vpop.f32.mrb[0].mxu0
          %v1402 = vpop.f32.mrb[0].mxu0
          %v1403 = vpop.f32.mrb[0].mxu0
          %1404 = vdwg.mxu0
          %v1405 = vadd.f32 %v1333, %v1400
          %s1406 = scalar_lea.vmem [#allocation2], 16
          %v1407 = vld [vmem:[%s1406] sm:$0x1]
          %v1408 = vld [vmem:[%s1406 + $0x18] sm:$0x1]
          %v1409 = vpack.c.bf16 %v1407, %v1407
          %v1410 = vpack.c.bf16 %v1408, %v1408
          %s1411 = scalar_lea.vmem [#allocation6], 256
          %v1412 = vld [vmem:[%s1411] sm:$0xf]
          %v1413 = vld [vmem:[%s1411 + $0x4] sm:$0xf]
          %v1414 = vld [vmem:[%s1411 + $0x8] sm:$0xf]
          %v1415 = vld [vmem:[%s1411 + $0xc] sm:$0xf]
          %v1418 = vunpack.c.l.b16 %v1409
          %v1419 = vunpack.c.l.b16 %v1410
          %v1420 = vrot.slane %v1419, 7
          %v1421 = vsel %vm277, %v1420, %v1418
          %v1422 = vpack.c.b16 %v1421, %v1421
          %v1427 = vunpack.c.l.b16 %v1412
          %v1428 = vunpack.c.l.b16 %v1413
          %v1429 = vunpack.c.l.b16 %v1414
          %v1430 = vunpack.c.l.b16 %v1415
          %v1431 = vpack.c.b16 %v1428, %v1427
          %v1432 = vpack.c.b16 %v1430, %v1429
          %v1436 = vsel %vm244, %v1422, 0
          %1438 = vmatprep.subr.bf16.mxu0 0
          %1439 = vmatpush1.bf16.msra.mxu0 %v1431
          %1440 = vmatprep.subr.bf16.mxu0 0
          %1441 = vmatpush1.bf16.msra.mxu0 %v1432
          %1442 = vmatprep.subr.bf16.mxu0 0
          %1443 = vmatpush1.bf16.msra.mxu0 0
          %1444 = vmatprep.subr.bf16.mxu0 0
          %1445 = vmatpush1.bf16.msra.mxu0 0
          %1446 = vmatprep.subr.bf16.mxu0 0
          %1447 = vmatpush1.bf16.msra.mxu0 0
          %1448 = vmatprep.subr.bf16.mxu0 0
          %1449 = vmatpush1.bf16.msra.mxu0 0
          %1450 = vmatprep.subr.bf16.mxu0 0
          %1451 = vmatpush1.bf16.msra.mxu0 0
          %1452 = vmatprep.subr.bf16.mxu0 0
          %1453 = vmatpush1.bf16.msra.mxu0 0
          %1454 = vmatprep.subr.bf16.mxu0 0
          %1455 = vmatpush1.bf16.msra.mxu0 0
          %1456 = vmatprep.subr.bf16.mxu0 0
          %1457 = vmatpush1.bf16.msra.mxu0 0
          %1458 = vmatprep.subr.bf16.mxu0 0
          %1459 = vmatpush1.bf16.msra.mxu0 0
          %1460 = vmatprep.subr.bf16.mxu0 0
          %1461 = vmatpush1.bf16.msra.mxu0 0
          %1462 = vmatprep.subr.bf16.mxu0 0
          %1463 = vmatpush1.bf16.msra.mxu0 0
          %1464 = vmatprep.subr.bf16.mxu0 0
          %1465 = vmatpush1.bf16.msra.mxu0 0
          %1466 = vmatprep.subr.bf16.mxu0 0
          %1467 = vmatpush1.bf16.msra.mxu0 0
          %1468 = vmatprep.subr.bf16.mxu0 0
          %1469 = vmatpush1.bf16.msra.mxu0 0
          %1470 = vmatprep.mubr.bf16.mxu0 0
          %1471 = vmatmul.mubr.bf16.gmra.mrb[0].mxu0 %v1436
          %v1472 = vpop.f32.mrb[0].mxu0
          %v1473 = vadd.f32 0.0, %v1472
          %v1474 = vpop.f32.mrb[0].mxu0
          %v1475 = vpop.f32.mrb[0].mxu0
          %v1476 = vpop.f32.mrb[0].mxu0
          %1477 = vdwg.mxu0
          %v1478 = vadd.f32 %v1405, %v1473
          %v1479 = vld [vmem:[%s1406 + $0x1] sm:$0x1]
          %v1480 = vld [vmem:[%s1406 + $0x19] sm:$0x1]
          %v1481 = vpack.c.bf16 %v1479, %v1479
          %v1482 = vpack.c.bf16 %v1480, %v1480
          %s1483 = scalar_lea.vmem [#allocation6], 272
          %v1484 = vld [vmem:[%s1483] sm:$0xf]
          %v1485 = vld [vmem:[%s1483 + $0x4] sm:$0xf]
          %v1486 = vld [vmem:[%s1483 + $0x8] sm:$0xf]
          %v1487 = vld [vmem:[%s1483 + $0xc] sm:$0xf]
          %v1490 = vunpack.c.l.b16 %v1481
          %v1491 = vunpack.c.l.b16 %v1482
          %v1492 = vrot.slane %v1491, 7
          %v1493 = vsel %vm277, %v1492, %v1490
          %v1494 = vpack.c.b16 %v1493, %v1493
          %v1499 = vunpack.c.l.b16 %v1484
          %v1500 = vunpack.c.l.b16 %v1485
          %v1501 = vunpack.c.l.b16 %v1486
          %v1502 = vunpack.c.l.b16 %v1487
          %v1503 = vpack.c.b16 %v1500, %v1499
          %v1504 = vpack.c.b16 %v1502, %v1501
          %v1508 = vsel %vm244, %v1494, 0
          %1510 = vmatprep.subr.bf16.mxu0 0
          %1511 = vmatpush1.bf16.msra.mxu0 %v1503
          %1512 = vmatprep.subr.bf16.mxu0 0
          %1513 = vmatpush1.bf16.msra.mxu0 %v1504
          %1514 = vmatprep.subr.bf16.mxu0 0
          %1515 = vmatpush1.bf16.msra.mxu0 0
          %1516 = vmatprep.subr.bf16.mxu0 0
          %1517 = vmatpush1.bf16.msra.mxu0 0
          %1518 = vmatprep.subr.bf16.mxu0 0
          %1519 = vmatpush1.bf16.msra.mxu0 0
          %1520 = vmatprep.subr.bf16.mxu0 0
          %1521 = vmatpush1.bf16.msra.mxu0 0
          %1522 = vmatprep.subr.bf16.mxu0 0
          %1523 = vmatpush1.bf16.msra.mxu0 0
          %1524 = vmatprep.subr.bf16.mxu0 0
          %1525 = vmatpush1.bf16.msra.mxu0 0
          %1526 = vmatprep.subr.bf16.mxu0 0
          %1527 = vmatpush1.bf16.msra.mxu0 0
          %1528 = vmatprep.subr.bf16.mxu0 0
          %1529 = vmatpush1.bf16.msra.mxu0 0
          %1530 = vmatprep.subr.bf16.mxu0 0
          %1531 = vmatpush1.bf16.msra.mxu0 0
          %1532 = vmatprep.subr.bf16.mxu0 0
          %1533 = vmatpush1.bf16.msra.mxu0 0
          %1534 = vmatprep.subr.bf16.mxu0 0
          %1535 = vmatpush1.bf16.msra.mxu0 0
          %1536 = vmatprep.subr.bf16.mxu0 0
          %1537 = vmatpush1.bf16.msra.mxu0 0
          %1538 = vmatprep.subr.bf16.mxu0 0
          %1539 = vmatpush1.bf16.msra.mxu0 0
          %1540 = vmatprep.subr.bf16.mxu0 0
          %1541 = vmatpush1.bf16.msra.mxu0 0
          %1542 = vmatprep.mubr.bf16.mxu0 0
          %1543 = vmatmul.mubr.bf16.gmra.mrb[0].mxu0 %v1508
          %v1544 = vpop.f32.mrb[0].mxu0
          %v1545 = vadd.f32 0.0, %v1544
          %v1546 = vpop.f32.mrb[0].mxu0
          %v1547 = vpop.f32.mrb[0].mxu0
          %v1548 = vpop.f32.mrb[0].mxu0
          %1549 = vdwg.mxu0
          %v1550 = vadd.f32 %v1478, %v1545
          %v1551 = vld [vmem:[%s1406 + $0x2] sm:$0x1]
          %v1552 = vld [vmem:[%s1406 + $0x1a] sm:$0x1]
          %v1553 = vpack.c.bf16 %v1551, %v1551
          %v1554 = vpack.c.bf16 %v1552, %v1552
          %s1555 = scalar_lea.vmem [#allocation6], 288
          %v1556 = vld [vmem:[%s1555] sm:$0xf]
          %v1557 = vld [vmem:[%s1555 + $0x4] sm:$0xf]
          %v1558 = vld [vmem:[%s1555 + $0x8] sm:$0xf]
          %v1559 = vld [vmem:[%s1555 + $0xc] sm:$0xf]
          %v1562 = vunpack.c.l.b16 %v1553
          %v1563 = vunpack.c.l.b16 %v1554
          %v1564 = vrot.slane %v1563, 7
          %v1565 = vsel %vm277, %v1564, %v1562
          %v1566 = vpack.c.b16 %v1565, %v1565
          %v1571 = vunpack.c.l.b16 %v1556
          %v1572 = vunpack.c.l.b16 %v1557
          %v1573 = vunpack.c.l.b16 %v1558
          %v1574 = vunpack.c.l.b16 %v1559
          %v1575 = vpack.c.b16 %v1572, %v1571
          %v1576 = vpack.c.b16 %v1574, %v1573
          %v1580 = vsel %vm244, %v1566, 0
          %1582 = vmatprep.subr.bf16.mxu0 0
          %1583 = vmatpush1.bf16.msra.mxu0 %v1575
          %1584 = vmatprep.subr.bf16.mxu0 0
          %1585 = vmatpush1.bf16.msra.mxu0 %v1576
          %1586 = vmatprep.subr.bf16.mxu0 0
          %1587 = vmatpush1.bf16.msra.mxu0 0
          %1588 = vmatprep.subr.bf16.mxu0 0
          %1589 = vmatpush1.bf16.msra.mxu0 0
          %1590 = vmatprep.subr.bf16.mxu0 0
          %1591 = vmatpush1.bf16.msra.mxu0 0
          %1592 = vmatprep.subr.bf16.mxu0 0
          %1593 = vmatpush1.bf16.msra.mxu0 0
          %1594 = vmatprep.subr.bf16.mxu0 0
          %1595 = vmatpush1.bf16.msra.mxu0 0
          %1596 = vmatprep.subr.bf16.mxu0 0
          %1597 = vmatpush1.bf16.msra.mxu0 0
          %1598 = vmatprep.subr.bf16.mxu0 0
          %1599 = vmatpush1.bf16.msra.mxu0 0
          %1600 = vmatprep.subr.bf16.mxu0 0
          %1601 = vmatpush1.bf16.msra.mxu0 0
          %1602 = vmatprep.subr.bf16.mxu0 0
          %1603 = vmatpush1.bf16.msra.mxu0 0
          %1604 = vmatprep.subr.bf16.mxu0 0
          %1605 = vmatpush1.bf16.msra.mxu0 0
          %1606 = vmatprep.subr.bf16.mxu0 0
          %1607 = vmatpush1.bf16.msra.mxu0 0
          %1608 = vmatprep.subr.bf16.mxu0 0
          %1609 = vmatpush1.bf16.msra.mxu0 0
          %1610 = vmatprep.subr.bf16.mxu0 0
          %1611 = vmatpush1.bf16.msra.mxu0 0
          %1612 = vmatprep.subr.bf16.mxu0 0
          %1613 = vmatpush1.bf16.msra.mxu0 0
          %1614 = vmatprep.mubr.bf16.mxu0 0
          %1615 = vmatmul.mubr.bf16.gmra.mrb[0].mxu0 %v1580
          %v1616 = vpop.f32.mrb[0].mxu0
          %v1617 = vadd.f32 0.0, %v1616
          %v1618 = vpop.f32.mrb[0].mxu0
          %v1619 = vpop.f32.mrb[0].mxu0
          %v1620 = vpop.f32.mrb[0].mxu0
          %1621 = vdwg.mxu0
          %v1622 = vadd.f32 %v1550, %v1617
          %v1623 = vld [vmem:[%s1406 + $0x3] sm:$0x1]
          %v1624 = vld [vmem:[%s1406 + $0x1b] sm:$0x1]
          %v1625 = vpack.c.bf16 %v1623, %v1623
          %v1626 = vpack.c.bf16 %v1624, %v1624
          %s1627 = scalar_lea.vmem [#allocation6], 304
          %v1628 = vld [vmem:[%s1627] sm:$0xf]
          %v1629 = vld [vmem:[%s1627 + $0x4] sm:$0xf]
          %v1630 = vld [vmem:[%s1627 + $0x8] sm:$0xf]
          %v1631 = vld [vmem:[%s1627 + $0xc] sm:$0xf]
          %v1634 = vunpack.c.l.b16 %v1625
          %v1635 = vunpack.c.l.b16 %v1626
          %v1636 = vrot.slane %v1635, 7
          %v1637 = vsel %vm277, %v1636, %v1634
          %v1638 = vpack.c.b16 %v1637, %v1637
          %v1643 = vunpack.c.l.b16 %v1628
          %v1644 = vunpack.c.l.b16 %v1629
          %v1645 = vunpack.c.l.b16 %v1630
          %v1646 = vunpack.c.l.b16 %v1631
          %v1647 = vpack.c.b16 %v1644, %v1643
          %v1648 = vpack.c.b16 %v1646, %v1645
          %v1652 = vsel %vm244, %v1638, 0
          %1654 = vmatprep.subr.bf16.mxu0 0
          %1655 = vmatpush1.bf16.msra.mxu0 %v1647
          %1656 = vmatprep.subr.bf16.mxu0 0
          %1657 = vmatpush1.bf16.msra.mxu0 %v1648
          %1658 = vmatprep.subr.bf16.mxu0 0
          %1659 = vmatpush1.bf16.msra.mxu0 0
          %1660 = vmatprep.subr.bf16.mxu0 0
          %1661 = vmatpush1.bf16.msra.mxu0 0
          %1662 = vmatprep.subr.bf16.mxu0 0
          %1663 = vmatpush1.bf16.msra.mxu0 0
          %1664 = vmatprep.subr.bf16.mxu0 0
          %1665 = vmatpush1.bf16.msra.mxu0 0
          %1666 = vmatprep.subr.bf16.mxu0 0
          %1667 = vmatpush1.bf16.msra.mxu0 0
          %1668 = vmatprep.subr.bf16.mxu0 0
          %1669 = vmatpush1.bf16.msra.mxu0 0
          %1670 = vmatprep.subr.bf16.mxu0 0
          %1671 = vmatpush1.bf16.msra.mxu0 0
          %1672 = vmatprep.subr.bf16.mxu0 0
          %1673 = vmatpush1.bf16.msra.mxu0 0
          %1674 = vmatprep.subr.bf16.mxu0 0
          %1675 = vmatpush1.bf16.msra.mxu0 0
          %1676 = vmatprep.subr.bf16.mxu0 0
          %1677 = vmatpush1.bf16.msra.mxu0 0
          %1678 = vmatprep.subr.bf16.mxu0 0
          %1679 = vmatpush1.bf16.msra.mxu0 0
          %1680 = vmatprep.subr.bf16.mxu0 0
          %1681 = vmatpush1.bf16.msra.mxu0 0
          %1682 = vmatprep.subr.bf16.mxu0 0
          %1683 = vmatpush1.bf16.msra.mxu0 0
          %1684 = vmatprep.subr.bf16.mxu0 0
          %1685 = vmatpush1.bf16.msra.mxu0 0
          %1686 = vmatprep.mubr.bf16.mxu0 0
          %1687 = vmatmul.mubr.bf16.gmra.mrb[0].mxu0 %v1652
          %v1688 = vpop.f32.mrb[0].mxu0
          %v1689 = vadd.f32 0.0, %v1688
          %v1690 = vpop.f32.mrb[0].mxu0
          %v1691 = vpop.f32.mrb[0].mxu0
          %v1692 = vpop.f32.mrb[0].mxu0
          %1693 = vdwg.mxu0
          %v1694 = vadd.f32 %v1622, %v1689
          %v1695 = vld [vmem:[%s1406 + $0x4] sm:$0x1]
          %v1696 = vld [vmem:[%s1406 + $0x1c] sm:$0x1]
          %v1697 = vpack.c.bf16 %v1695, %v1695
          %v1698 = vpack.c.bf16 %v1696, %v1696
          %s1699 = scalar_lea.vmem [#allocation6], 320
          %v1700 = vld [vmem:[%s1699] sm:$0xf]
          %v1701 = vld [vmem:[%s1699 + $0x4] sm:$0xf]
          %v1702 = vld [vmem:[%s1699 + $0x8] sm:$0xf]
          %v1703 = vld [vmem:[%s1699 + $0xc] sm:$0xf]
          %v1706 = vunpack.c.l.b16 %v1697
          %v1707 = vunpack.c.l.b16 %v1698
          %v1708 = vrot.slane %v1707, 7
          %v1709 = vsel %vm277, %v1708, %v1706
          %v1710 = vpack.c.b16 %v1709, %v1709
          %v1715 = vunpack.c.l.b16 %v1700
          %v1716 = vunpack.c.l.b16 %v1701
          %v1717 = vunpack.c.l.b16 %v1702
          %v1718 = vunpack.c.l.b16 %v1703
          %v1719 = vpack.c.b16 %v1716, %v1715
          %v1720 = vpack.c.b16 %v1718, %v1717
          %v1724 = vsel %vm244, %v1710, 0
          %1726 = vmatprep.subr.bf16.mxu0 0
          %1727 = vmatpush1.bf16.msra.mxu0 %v1719
          %1728 = vmatprep.subr.bf16.mxu0 0
          %1729 = vmatpush1.bf16.msra.mxu0 %v1720
          %1730 = vmatprep.subr.bf16.mxu0 0
          %1731 = vmatpush1.bf16.msra.mxu0 0
          %1732 = vmatprep.subr.bf16.mxu0 0
          %1733 = vmatpush1.bf16.msra.mxu0 0
          %1734 = vmatprep.subr.bf16.mxu0 0
          %1735 = vmatpush1.bf16.msra.mxu0 0
          %1736 = vmatprep.subr.bf16.mxu0 0
          %1737 = vmatpush1.bf16.msra.mxu0 0
          %1738 = vmatprep.subr.bf16.mxu0 0
          %1739 = vmatpush1.bf16.msra.mxu0 0
          %1740 = vmatprep.subr.bf16.mxu0 0
          %1741 = vmatpush1.bf16.msra.mxu0 0
          %1742 = vmatprep.subr.bf16.mxu0 0
          %1743 = vmatpush1.bf16.msra.mxu0 0
          %1744 = vmatprep.subr.bf16.mxu0 0
          %1745 = vmatpush1.bf16.msra.mxu0 0
          %1746 = vmatprep.subr.bf16.mxu0 0
          %1747 = vmatpush1.bf16.msra.mxu0 0
          %1748 = vmatprep.subr.bf16.mxu0 0
          %1749 = vmatpush1.bf16.msra.mxu0 0
          %1750 = vmatprep.subr.bf16.mxu0 0
          %1751 = vmatpush1.bf16.msra.mxu0 0
          %1752 = vmatprep.subr.bf16.mxu0 0
          %1753 = vmatpush1.bf16.msra.mxu0 0
          %1754 = vmatprep.subr.bf16.mxu0 0
          %1755 = vmatpush1.bf16.msra.mxu0 0
          %1756 = vmatprep.subr.bf16.mxu0 0
          %1757 = vmatpush1.bf16.msra.mxu0 0
          %1758 = vmatprep.mubr.bf16.mxu0 0
          %1759 = vmatmul.mubr.bf16.gmra.mrb[0].mxu0 %v1724
          %v1760 = vpop.f32.mrb[0].mxu0
          %v1761 = vadd.f32 0.0, %v1760
          %v1762 = vpop.f32.mrb[0].mxu0
          %v1763 = vpop.f32.mrb[0].mxu0
          %v1764 = vpop.f32.mrb[0].mxu0
          %1765 = vdwg.mxu0
          %v1766 = vadd.f32 %v1694, %v1761
          %v1767 = vld [vmem:[%s1406 + $0x5] sm:$0x1]
          %v1768 = vld [vmem:[%s1406 + $0x1d] sm:$0x1]
          %v1769 = vpack.c.bf16 %v1767, %v1767
          %v1770 = vpack.c.bf16 %v1768, %v1768
          %s1771 = scalar_lea.vmem [#allocation6], 336
          %v1772 = vld [vmem:[%s1771] sm:$0xf]
          %v1773 = vld [vmem:[%s1771 + $0x4] sm:$0xf]
          %v1774 = vld [vmem:[%s1771 + $0x8] sm:$0xf]
          %v1775 = vld [vmem:[%s1771 + $0xc] sm:$0xf]
          %v1778 = vunpack.c.l.b16 %v1769
          %v1779 = vunpack.c.l.b16 %v1770
          %v1780 = vrot.slane %v1779, 7
          %v1781 = vsel %vm277, %v1780, %v1778
          %v1782 = vpack.c.b16 %v1781, %v1781
          %v1787 = vunpack.c.l.b16 %v1772
          %v1788 = vunpack.c.l.b16 %v1773
          %v1789 = vunpack.c.l.b16 %v1774
          %v1790 = vunpack.c.l.b16 %v1775
          %v1791 = vpack.c.b16 %v1788, %v1787
          %v1792 = vpack.c.b16 %v1790, %v1789
          %v1796 = vsel %vm244, %v1782, 0
          %1798 = vmatprep.subr.bf16.mxu0 0
          %1799 = vmatpush1.bf16.msra.mxu0 %v1791
          %1800 = vmatprep.subr.bf16.mxu0 0
          %1801 = vmatpush1.bf16.msra.mxu0 %v1792
          %1802 = vmatprep.subr.bf16.mxu0 0
          %1803 = vmatpush1.bf16.msra.mxu0 0
          %1804 = vmatprep.subr.bf16.mxu0 0
          %1805 = vmatpush1.bf16.msra.mxu0 0
          %1806 = vmatprep.subr.bf16.mxu0 0
          %1807 = vmatpush1.bf16.msra.mxu0 0
          %1808 = vmatprep.subr.bf16.mxu0 0
          %1809 = vmatpush1.bf16.msra.mxu0 0
          %1810 = vmatprep.subr.bf16.mxu0 0
          %1811 = vmatpush1.bf16.msra.mxu0 0
          %1812 = vmatprep.subr.bf16.mxu0 0
          %1813 = vmatpush1.bf16.msra.mxu0 0
          %1814 = vmatprep.subr.bf16.mxu0 0
          %1815 = vmatpush1.bf16.msra.mxu0 0
          %1816 = vmatprep.subr.bf16.mxu0 0
          %1817 = vmatpush1.bf16.msra.mxu0 0
          %1818 = vmatprep.subr.bf16.mxu0 0
          %1819 = vmatpush1.bf16.msra.mxu0 0
          %1820 = vmatprep.subr.bf16.mxu0 0
          %1821 = vmatpush1.bf16.msra.mxu0 0
          %1822 = vmatprep.subr.bf16.mxu0 0
          %1823 = vmatpush1.bf16.msra.mxu0 0
          %1824 = vmatprep.subr.bf16.mxu0 0
          %1825 = vmatpush1.bf16.msra.mxu0 0
          %1826 = vmatprep.subr.bf16.mxu0 0
          %1827 = vmatpush1.bf16.msra.mxu0 0
          %1828 = vmatprep.subr.bf16.mxu0 0
          %1829 = vmatpush1.bf16.msra.mxu0 0
          %1830 = vmatprep.mubr.bf16.mxu0 0
          %1831 = vmatmul.mubr.bf16.gmra.mrb[0].mxu0 %v1796
          %v1832 = vpop.f32.mrb[0].mxu0
          %v1833 = vadd.f32 0.0, %v1832
          %v1834 = vpop.f32.mrb[0].mxu0
          %v1835 = vpop.f32.mrb[0].mxu0
          %v1836 = vpop.f32.mrb[0].mxu0
          %1837 = vdwg.mxu0
          %v1838 = vadd.f32 %v1766, %v1833
          %v1839 = vld [vmem:[%s1406 + $0x6] sm:$0x1]
          %v1840 = vld [vmem:[%s1406 + $0x1e] sm:$0x1]
          %v1841 = vpack.c.bf16 %v1839, %v1839
          %v1842 = vpack.c.bf16 %v1840, %v1840
          %s1843 = scalar_lea.vmem [#allocation6], 352
          %v1844 = vld [vmem:[%s1843] sm:$0xf]
          %v1845 = vld [vmem:[%s1843 + $0x4] sm:$0xf]
          %v1846 = vld [vmem:[%s1843 + $0x8] sm:$0xf]
          %v1847 = vld [vmem:[%s1843 + $0xc] sm:$0xf]
          %v1850 = vunpack.c.l.b16 %v1841
          %v1851 = vunpack.c.l.b16 %v1842
          %v1852 = vrot.slane %v1851, 7
          %v1853 = vsel %vm277, %v1852, %v1850
          %v1854 = vpack.c.b16 %v1853, %v1853
          %v1859 = vunpack.c.l.b16 %v1844
          %v1860 = vunpack.c.l.b16 %v1845
          %v1861 = vunpack.c.l.b16 %v1846
          %v1862 = vunpack.c.l.b16 %v1847
          %v1863 = vpack.c.b16 %v1860, %v1859
          %v1864 = vpack.c.b16 %v1862, %v1861
          %v1868 = vsel %vm244, %v1854, 0
          %1870 = vmatprep.subr.bf16.mxu0 0
          %1871 = vmatpush1.bf16.msra.mxu0 %v1863
          %1872 = vmatprep.subr.bf16.mxu0 0
          %1873 = vmatpush1.bf16.msra.mxu0 %v1864
          %1874 = vmatprep.subr.bf16.mxu0 0
          %1875 = vmatpush1.bf16.msra.mxu0 0
          %1876 = vmatprep.subr.bf16.mxu0 0
          %1877 = vmatpush1.bf16.msra.mxu0 0
          %1878 = vmatprep.subr.bf16.mxu0 0
          %1879 = vmatpush1.bf16.msra.mxu0 0
          %1880 = vmatprep.subr.bf16.mxu0 0
          %1881 = vmatpush1.bf16.msra.mxu0 0
          %1882 = vmatprep.subr.bf16.mxu0 0
          %1883 = vmatpush1.bf16.msra.mxu0 0
          %1884 = vmatprep.subr.bf16.mxu0 0
          %1885 = vmatpush1.bf16.msra.mxu0 0
          %1886 = vmatprep.subr.bf16.mxu0 0
          %1887 = vmatpush1.bf16.msra.mxu0 0
          %1888 = vmatprep.subr.bf16.mxu0 0
          %1889 = vmatpush1.bf16.msra.mxu0 0
          %1890 = vmatprep.subr.bf16.mxu0 0
          %1891 = vmatpush1.bf16.msra.mxu0 0
          %1892 = vmatprep.subr.bf16.mxu0 0
          %1893 = vmatpush1.bf16.msra.mxu0 0
          %1894 = vmatprep.subr.bf16.mxu0 0
          %1895 = vmatpush1.bf16.msra.mxu0 0
          %1896 = vmatprep.subr.bf16.mxu0 0
          %1897 = vmatpush1.bf16.msra.mxu0 0
          %1898 = vmatprep.subr.bf16.mxu0 0
          %1899 = vmatpush1.bf16.msra.mxu0 0
          %1900 = vmatprep.subr.bf16.mxu0 0
          %1901 = vmatpush1.bf16.msra.mxu0 0
          %1902 = vmatprep.mubr.bf16.mxu0 0
          %1903 = vmatmul.mubr.bf16.gmra.mrb[0].mxu0 %v1868
          %v1904 = vpop.f32.mrb[0].mxu0
          %v1905 = vadd.f32 0.0, %v1904
          %v1906 = vpop.f32.mrb[0].mxu0
          %v1907 = vpop.f32.mrb[0].mxu0
          %v1908 = vpop.f32.mrb[0].mxu0
          %1909 = vdwg.mxu0
          %v1910 = vadd.f32 %v1838, %v1905
          %v1911 = vld [vmem:[%s1406 + $0x7] sm:$0x1]
          %v1912 = vld [vmem:[%s1406 + $0x1f] sm:$0x1]
          %v1913 = vpack.c.bf16 %v1911, %v1911
          %v1914 = vpack.c.bf16 %v1912, %v1912
          %s1915 = scalar_lea.vmem [#allocation6], 368
          %v1916 = vld [vmem:[%s1915] sm:$0xf]
          %v1917 = vld [vmem:[%s1915 + $0x4] sm:$0xf]
          %v1918 = vld [vmem:[%s1915 + $0x8] sm:$0xf]
          %v1919 = vld [vmem:[%s1915 + $0xc] sm:$0xf]
          %v1922 = vunpack.c.l.b16 %v1913
          %v1923 = vunpack.c.l.b16 %v1914
          %v1924 = vrot.slane %v1923, 7
          %v1925 = vsel %vm277, %v1924, %v1922
          %v1926 = vpack.c.b16 %v1925, %v1925
          %v1931 = vunpack.c.l.b16 %v1916
          %v1932 = vunpack.c.l.b16 %v1917
          %v1933 = vunpack.c.l.b16 %v1918
          %v1934 = vunpack.c.l.b16 %v1919
          %v1935 = vpack.c.b16 %v1932, %v1931
          %v1936 = vpack.c.b16 %v1934, %v1933
          %v1940 = vsel %vm244, %v1926, 0
          %1942 = vmatprep.subr.bf16.mxu0 0
          %1943 = vmatpush1.bf16.msra.mxu0 %v1935
          %1944 = vmatprep.subr.bf16.mxu0 0
          %1945 = vmatpush1.bf16.msra.mxu0 %v1936
          %1946 = vmatprep.subr.bf16.mxu0 0
          %1947 = vmatpush1.bf16.msra.mxu0 0
          %1948 = vmatprep.subr.bf16.mxu0 0
          %1949 = vmatpush1.bf16.msra.mxu0 0
          %1950 = vmatprep.subr.bf16.mxu0 0
          %1951 = vmatpush1.bf16.msra.mxu0 0
          %1952 = vmatprep.subr.bf16.mxu0 0
          %1953 = vmatpush1.bf16.msra.mxu0 0
          %1954 = vmatprep.subr.bf16.mxu0 0
          %1955 = vmatpush1.bf16.msra.mxu0 0
          %1956 = vmatprep.subr.bf16.mxu0 0
          %1957 = vmatpush1.bf16.msra.mxu0 0
          %1958 = vmatprep.subr.bf16.mxu0 0
          %1959 = vmatpush1.bf16.msra.mxu0 0
          %1960 = vmatprep.subr.bf16.mxu0 0
          %1961 = vmatpush1.bf16.msra.mxu0 0
          %1962 = vmatprep.subr.bf16.mxu0 0
          %1963 = vmatpush1.bf16.msra.mxu0 0
          %1964 = vmatprep.subr.bf16.mxu0 0
          %1965 = vmatpush1.bf16.msra.mxu0 0
          %1966 = vmatprep.subr.bf16.mxu0 0
          %1967 = vmatpush1.bf16.msra.mxu0 0
          %1968 = vmatprep.subr.bf16.mxu0 0
          %1969 = vmatpush1.bf16.msra.mxu0 0
          %1970 = vmatprep.subr.bf16.mxu0 0
          %1971 = vmatpush1.bf16.msra.mxu0 0
          %1972 = vmatprep.subr.bf16.mxu0 0
          %1973 = vmatpush1.bf16.msra.mxu0 0
          %1974 = vmatprep.mubr.bf16.mxu0 0
          %1975 = vmatmul.mubr.bf16.gmra.mrb[0].mxu0 %v1940
          %v1976 = vpop.f32.mrb[0].mxu0
          %v1977 = vadd.f32 0.0, %v1976
          %v1978 = vpop.f32.mrb[0].mxu0
          %v1979 = vpop.f32.mrb[0].mxu0
          %v1980 = vpop.f32.mrb[0].mxu0
          %1981 = vdwg.mxu0
          %v1982 = vadd.f32 %v1910, %v1977
          %v1983 = vld [vmem:[%s2] sm:$0x1]
          %v1985 = vlaneseq
          %v1986 = vshrl.u32 %v1985, 7
          %v1987 = vsub.s32 0, %v1986
          %v1988 = vrot.slane %v1983, %v1987
          %v1990 = vadd.f32 %v1982, %v1988
          %1991 = vst [vmem:[#allocation8] sm:$0x3] %v1990
        $region48: #{tpu_custom_call.1} parent=31 // pred_fallthru
          _
        // Predicated region
        $region49: #{tpu_custom_call.1} parent=31 // pred_check
          %p1992 = pneg %p119
        $region50: #{tpu_custom_call.1} parent=31 // pred_check_branch
          %1994 = sbr.rel (%p1992) target = $region52
        $region51: #{tpu_custom_call.1} parent=31 // pred_region
          %s1996 = ssub.s32 32, 32
          %1997 = vsyncadd [#allocation5], %s1996
          %s1998 = smul.addr %s23, 32
          %s1999 = scalar_lea.hbm %s3, %s1998
          %s2001 = sshll.u32 [#allocation8], 4
          %s2002 = int_to_ptr.vmem [resolvable:$true] %s2001
          %2004 = dma.vmem_to_hbm [thread:$0]  %s2002, 32, %s1999, [#allocation5]
        $region52: #{tpu_custom_call.1} parent=31 // pred_fallthru
          _
        // Predicated region
        $region53: #{tpu_custom_call.1} parent=31 // pred_check
          %p2005 = pneg %p119
        $region54: #{tpu_custom_call.1} parent=31 // pred_check_branch
          %2007 = sbr.rel (%p2005) target = $region56
        $region55: #{tpu_custom_call.1} parent=31 // pred_region
          %2008 = dma.done [#allocation5], 32
        $region56: #{tpu_custom_call.1} parent=31 // pred_fallthru
          _
      $region32: #{tpu_custom_call.1} parent=5 // pred_fallthru
        _
      %p2009 = scmp.le.s32.totalorder 2, %s14
      // Predicated region
      $region57: #{tpu_custom_call.1} parent=5 // pred_check
        %p2010 = pneg %p2009
      $region58: #{tpu_custom_call.1} parent=5 // pred_check_branch
        %2012 = sbr.rel (%p2010) target = $region60
      $region59: #{tpu_custom_call.1} parent=5 // pred_region
        %s2013 = ssub.s32 %s14, 2
      $region60: #{tpu_custom_call.1} parent=5 // pred_fallthru
        _
    $region6: #{tpu_custom_call.1} parent=1 // loop_footer
      %s18 = sadd.s32 1, %s14
    $region7: #{tpu_custom_call.1} parent=1 // loop_footer_branch
      %13 = sbr.rel target = $region3
    $region8: #{tpu_custom_call.1} parent=1 // loop_exit
      _
    %2014 = vsyncpa [#allocation4], 1
    %s2015 = scalar_lea.sflag [#allocation4], 1
    %2016 = vsyncpa %s2015, 1
    %2017 = vsyncpa [#allocation7], 1
    %2018 = vsyncpa [#allocation5], 1
    %s2019 = scalar_lea.sflag [#allocation5], 1
    %2020 = vsyncpa %s2019, 1

</llo_original>
